<compile_context>
chip_gen: v7x
topology: tpu7x:2x2x1
jax: 0.10.0
libtpu: 0.0.40
codegen_flags: <defaults>
</compile_context>

<pallas_src>
from functools import partial

import jax
import jax.numpy as jnp
import numpy as np
from jax.experimental import pallas as pl
from jax.experimental.pallas import tpu as pltpu

N_IN = 2           # input features
N_HID = 10         # hidden width
CL = 256           # lanes per in-kernel chunk: each (8, CL) array = 2 vregs
GRANULE = 8 * CL   # batch granularity (one sublane-dense (8, CL) block)


def _round_up(n, m):
    return ((n + m - 1) // m) * m


def mlp_kernel(w1_ref, b1_ref, w2_ref, b2_ref, w3_ref, b3_ref, x_ref, o_ref):
    """x_ref: (2, 8, TL) f32 VMEM (batch folded onto sublane x lane).
    o_ref: (8, TL) f32 VMEM.  Weights/biases are flat f32 SMEM arrays."""
    tl = x_ref.shape[2]

    # Hoist all 151 weight/bias scalars out of the chunk loop (cheap SMEM loads).
    w1 = [[w1_ref[j * N_IN + i] for i in range(N_IN)] for j in range(N_HID)]
    b1 = [b1_ref[j] for j in range(N_HID)]
    w2 = [[w2_ref[k * N_HID + j] for j in range(N_HID)] for k in range(N_HID)]
    b2 = [b2_ref[k] for k in range(N_HID)]
    w3 = [w3_ref[k] for k in range(N_HID)]
    b3 = b3_ref[0]

    # Walk the tile in (8, CL) chunks so the unrolled MLP fits in vregs.
    @pl.loop(0, tl // CL)
    def _(c):
        s = pl.multiple_of(c * CL, CL)
        x0 = x_ref[0, :, pl.ds(s, CL)]          # (8, CL) feature 0, batch-dense
        x1 = x_ref[1, :, pl.ds(s, CL)]          # (8, CL) feature 1

        # Layer 1 (2 -> 10) + ReLU: broadcast multiply/add on the VPU.
        h1 = [jnp.maximum(w1[j][0] * x0 + w1[j][1] * x1 + b1[j], 0.0)
              for j in range(N_HID)]

        # Layer 2 (10 -> 10) + ReLU, folded directly into layer 3 (10 -> 1)
        # so only one (8, CL) accumulator stays live per output row.
        acc = None
        for k in range(N_HID):
            t = w2[k][0] * h1[0]
            for j in range(1, N_HID):
                t = t + w2[k][j] * h1[j]
            h2k = jnp.maximum(t + b2[k], 0.0)
            contrib = w3[k] * h2k
            acc = contrib if acc is None else acc + contrib

        # Fully dense (8, CL) store — no masked/partial vst.
        o_ref[:, pl.ds(s, CL)] = (acc + b3).astype(o_ref.dtype)


def _choose_tile(batch, tb_max):
    b_ceil = _round_up(max(batch, 1), GRANULE)
    n_gran = b_ceil // GRANULE
    tb_gran = max(1, min(tb_max // GRANULE, n_gran))
    # v7x megacore: keep >= 2 grid steps whenever there is >1 granule of work.
    if n_gran >= 2:
        tb_gran = min(tb_gran, -(-n_gran // 2))
    tb = tb_gran * GRANULE
    b_pad = _round_up(b_ceil, tb)
    return tb, b_pad


@partial(jax.jit, static_argnames=("tb_max",))
def circle_model_v4(x, params, *, tb_max=65536):
    """Forward pass of CircleModelV4 via a single Pallas TPU kernel.

    x: (B, 2) float32 (PyTorch layout).  Returns (B, 1) float32 logits.
    """
    B = x.shape[0]
    tb, b_pad = _choose_tile(B, tb_max)
    tl = tb // 8
    grid = b_pad // tb

    # (B,2) -> zero-pad -> features-major -> fold batch onto (sublane, lane).
    # Batch element m of tile g lands at row (g*8 + m//tl), lane (m % tl).
    xt = jnp.pad(x.astype(jnp.float32), ((0, b_pad - B), (0, 0))).T      # (2, b_pad)
    xf = xt.reshape(N_IN, b_pad // tl, tl)                               # (2, 8*grid, tl)

    w1 = params["w1"].astype(jnp.float32).reshape(-1)   # (20,)
    b1 = params["b1"].astype(jnp.float32).reshape(-1)   # (10,)
    w2 = params["w2"].astype(jnp.float32).reshape(-1)   # (100,)
    b2 = params["b2"].astype(jnp.float32).reshape(-1)   # (10,)
    w3 = params["w3"].astype(jnp.float32).reshape(-1)   # (10,)
    b3 = params["b3"].astype(jnp.float32).reshape(-1)   # (1,)

    cost = pl.CostEstimate(
        flops=2 * b_pad * (N_IN * N_HID + N_HID * N_HID + N_HID),
        transcendentals=0,
        bytes_accessed=(N_IN * b_pad + b_pad + 151) * 4,
    )

    smem = pl.BlockSpec(memory_space=pltpu.MemorySpace.SMEM)
    out2d = pl.pallas_call(
        mlp_kernel,
        out_shape=jax.ShapeDtypeStruct((b_pad // tl, tl), jnp.float32),
        grid_spec=pl.GridSpec(
            grid=(grid,),
            in_specs=[smem, smem, smem, smem, smem, smem,
                      pl.BlockSpec((N_IN, 8, tl), lambda i: (0, i, 0))],
            out_specs=pl.BlockSpec((8, tl), lambda i: (i, 0)),
        ),
        compiler_params=pltpu.CompilerParams(
            dimension_semantics=("parallel",),
            vmem_limit_bytes=32 * 1024 * 1024,
        ),
        cost_estimate=cost,
    )(w1, b1, w2, b2, w3, b3, xf)

    # Unfold (8*grid, tl) back to batch order, drop padding rows.
    return out2d.reshape(-1)[:B].reshape(B, 1)


def init_params(key):
    """Deterministic init mimicking nn.Linear's U(-1/sqrt(fan_in), 1/sqrt(fan_in)).
    Weights keep the PyTorch (out_features, in_features) orientation."""
    def linear(k, fan_in, fan_out):
        kw, kb = jax.random.split(k)
        bound = 1.0 / np.sqrt(fan_in)
        w = jax.random.uniform(kw, (fan_out, fan_in), jnp.float32, -bound, bound)
        b = jax.random.uniform(kb, (fan_out,), jnp.float32, -bound, bound)
        return w, b

    k1, k2, k3 = jax.random.split(key, 3)
    w1, b1 = linear(k1, 2, 10)          # (10, 2), (10,)
    w2, b2 = linear(k2, 10, 10)         # (10, 10), (10,)
    w3, b3 = linear(k3, 10, 1)          # (1, 10), (1,)
    return {"w1": w1, "b1": b1, "w2": w2, "b2": b2, "w3": w3, "b3": b3}


def reference_forward(x, p):
    h1 = jnp.maximum(x @ p["w1"].T + p["b1"], 0.0)
    h2 = jnp.maximum(h1 @ p["w2"].T + p["b2"], 0.0)
    return h2 @ p["w3"].T + p["b3"]


if __name__ == "__main__":
    key = jax.random.PRNGKey(0)
    k_x, k_p = jax.random.split(key)
    params = init_params(k_p)

    # Small batch consistent with the module (2 input features, 1 logit).
    B = 8
    x = jax.random.normal(k_x, (B, 2), jnp.float32)
    out = jax.block_until_ready(circle_model_v4(x, params))
    ref = reference_forward(x, params)
    np.testing.assert_allclose(np.asarray(out), np.asarray(ref), rtol=1e-5, atol=1e-5)
    assert out.shape == (B, 1) and out.dtype == jnp.float32

    # Exercise batch padding, a multi-step (>=2) grid, and the in-kernel chunk loop.
    B2 = 5000
    x2 = jax.random.normal(k_x, (B2, 2), jnp.float32)
    out2 = jax.block_until_ready(circle_model_v4(x2, params, tb_max=4096))
    ref2 = reference_forward(x2, params)
    np.testing.assert_allclose(np.asarray(out2), np.asarray(ref2), rtol=1e-5, atol=1e-5)
    assert out2.shape == (B2, 1)

    print("KERNEL_OK")
</pallas_src>

<mosaic_0001>
module attributes {stable_mosaic.version = 11 : i64} {
  func.func @mlp_kernel(%arg0: i32, %arg1: memref<20xf32, #tpu.memory_space<smem>>, %arg2: memref<10xf32, #tpu.memory_space<smem>>, %arg3: memref<100xf32, #tpu.memory_space<smem>>, %arg4: memref<10xf32, #tpu.memory_space<smem>>, %arg5: memref<10xf32, #tpu.memory_space<smem>>, %arg6: memref<1xf32, #tpu.memory_space<smem>>, %arg7: memref<2x8x256xf32, #tpu.memory_space<vmem>>, %arg8: memref<8x256xf32, #tpu.memory_space<vmem>>) attributes {dimension_semantics = [#tpu.dimension_semantics<parallel>], iteration_bounds = array<i64: 1>, scalar_prefetch = 0 : i64, scratch_operands = 0 : i64, tpu.core_type = #tpu.core_type<tc>, window_params = [{transform_indices = @transform_0, window_bounds = array<i64: 20>}, {transform_indices = @transform_1, window_bounds = array<i64: 10>}, {transform_indices = @transform_2, window_bounds = array<i64: 100>}, {transform_indices = @transform_3, window_bounds = array<i64: 10>}, {transform_indices = @transform_4, window_bounds = array<i64: 10>}, {transform_indices = @transform_5, window_bounds = array<i64: 1>}, {transform_indices = @transform_6, window_bounds = array<i64: 2, 8, 256>}, {transform_indices = @transform_7, window_bounds = array<i64: 8, 256>}]} {
    %c0 = arith.constant 0 : index
    %0 = memref.load %arg1[%c0] : memref<20xf32, #tpu.memory_space<smem>>
    %c1 = arith.constant 1 : index
    %1 = memref.load %arg1[%c1] : memref<20xf32, #tpu.memory_space<smem>>
    %c2 = arith.constant 2 : index
    %2 = memref.load %arg1[%c2] : memref<20xf32, #tpu.memory_space<smem>>
    %c3 = arith.constant 3 : index
    %3 = memref.load %arg1[%c3] : memref<20xf32, #tpu.memory_space<smem>>
    %c4 = arith.constant 4 : index
    %4 = memref.load %arg1[%c4] : memref<20xf32, #tpu.memory_space<smem>>
    %c5 = arith.constant 5 : index
    %5 = memref.load %arg1[%c5] : memref<20xf32, #tpu.memory_space<smem>>
    %c6 = arith.constant 6 : index
    %6 = memref.load %arg1[%c6] : memref<20xf32, #tpu.memory_space<smem>>
    %c7 = arith.constant 7 : index
    %7 = memref.load %arg1[%c7] : memref<20xf32, #tpu.memory_space<smem>>
    %c8 = arith.constant 8 : index
    %8 = memref.load %arg1[%c8] : memref<20xf32, #tpu.memory_space<smem>>
    %c9 = arith.constant 9 : index
    %9 = memref.load %arg1[%c9] : memref<20xf32, #tpu.memory_space<smem>>
    %c10 = arith.constant 10 : index
    %10 = memref.load %arg1[%c10] : memref<20xf32, #tpu.memory_space<smem>>
    %c11 = arith.constant 11 : index
    %11 = memref.load %arg1[%c11] : memref<20xf32, #tpu.memory_space<smem>>
    %c12 = arith.constant 12 : index
    %12 = memref.load %arg1[%c12] : memref<20xf32, #tpu.memory_space<smem>>
    %c13 = arith.constant 13 : index
    %13 = memref.load %arg1[%c13] : memref<20xf32, #tpu.memory_space<smem>>
    %c14 = arith.constant 14 : index
    %14 = memref.load %arg1[%c14] : memref<20xf32, #tpu.memory_space<smem>>
    %c15 = arith.constant 15 : index
    %15 = memref.load %arg1[%c15] : memref<20xf32, #tpu.memory_space<smem>>
    %c16 = arith.constant 16 : index
    %16 = memref.load %arg1[%c16] : memref<20xf32, #tpu.memory_space<smem>>
    %c17 = arith.constant 17 : index
    %17 = memref.load %arg1[%c17] : memref<20xf32, #tpu.memory_space<smem>>
    %c18 = arith.constant 18 : index
    %18 = memref.load %arg1[%c18] : memref<20xf32, #tpu.memory_space<smem>>
    %c19 = arith.constant 19 : index
    %19 = memref.load %arg1[%c19] : memref<20xf32, #tpu.memory_space<smem>>
    %c0_0 = arith.constant 0 : index
    %20 = memref.load %arg2[%c0_0] : memref<10xf32, #tpu.memory_space<smem>>
    %c1_1 = arith.constant 1 : index
    %21 = memref.load %arg2[%c1_1] : memref<10xf32, #tpu.memory_space<smem>>
    %c2_2 = arith.constant 2 : index
    %22 = memref.load %arg2[%c2_2] : memref<10xf32, #tpu.memory_space<smem>>
    %c3_3 = arith.constant 3 : index
    %23 = memref.load %arg2[%c3_3] : memref<10xf32, #tpu.memory_space<smem>>
    %c4_4 = arith.constant 4 : index
    %24 = memref.load %arg2[%c4_4] : memref<10xf32, #tpu.memory_space<smem>>
    %c5_5 = arith.constant 5 : index
    %25 = memref.load %arg2[%c5_5] : memref<10xf32, #tpu.memory_space<smem>>
    %c6_6 = arith.constant 6 : index
    %26 = memref.load %arg2[%c6_6] : memref<10xf32, #tpu.memory_space<smem>>
    %c7_7 = arith.constant 7 : index
    %27 = memref.load %arg2[%c7_7] : memref<10xf32, #tpu.memory_space<smem>>
    %c8_8 = arith.constant 8 : index
    %28 = memref.load %arg2[%c8_8] : memref<10xf32, #tpu.memory_space<smem>>
    %c9_9 = arith.constant 9 : index
    %29 = memref.load %arg2[%c9_9] : memref<10xf32, #tpu.memory_space<smem>>
    %c0_10 = arith.constant 0 : index
    %30 = memref.load %arg3[%c0_10] : memref<100xf32, #tpu.memory_space<smem>>
    %c1_11 = arith.constant 1 : index
    %31 = memref.load %arg3[%c1_11] : memref<100xf32, #tpu.memory_space<smem>>
    %c2_12 = arith.constant 2 : index
    %32 = memref.load %arg3[%c2_12] : memref<100xf32, #tpu.memory_space<smem>>
    %c3_13 = arith.constant 3 : index
    %33 = memref.load %arg3[%c3_13] : memref<100xf32, #tpu.memory_space<smem>>
    %c4_14 = arith.constant 4 : index
    %34 = memref.load %arg3[%c4_14] : memref<100xf32, #tpu.memory_space<smem>>
    %c5_15 = arith.constant 5 : index
    %35 = memref.load %arg3[%c5_15] : memref<100xf32, #tpu.memory_space<smem>>
    %c6_16 = arith.constant 6 : index
    %36 = memref.load %arg3[%c6_16] : memref<100xf32, #tpu.memory_space<smem>>
    %c7_17 = arith.constant 7 : index
    %37 = memref.load %arg3[%c7_17] : memref<100xf32, #tpu.memory_space<smem>>
    %c8_18 = arith.constant 8 : index
    %38 = memref.load %arg3[%c8_18] : memref<100xf32, #tpu.memory_space<smem>>
    %c9_19 = arith.constant 9 : index
    %39 = memref.load %arg3[%c9_19] : memref<100xf32, #tpu.memory_space<smem>>
    %c10_20 = arith.constant 10 : index
    %40 = memref.load %arg3[%c10_20] : memref<100xf32, #tpu.memory_space<smem>>
    %c11_21 = arith.constant 11 : index
    %41 = memref.load %arg3[%c11_21] : memref<100xf32, #tpu.memory_space<smem>>
    %c12_22 = arith.constant 12 : index
    %42 = memref.load %arg3[%c12_22] : memref<100xf32, #tpu.memory_space<smem>>
    %c13_23 = arith.constant 13 : index
    %43 = memref.load %arg3[%c13_23] : memref<100xf32, #tpu.memory_space<smem>>
    %c14_24 = arith.constant 14 : index
    %44 = memref.load %arg3[%c14_24] : memref<100xf32, #tpu.memory_space<smem>>
    %c15_25 = arith.constant 15 : index
    %45 = memref.load %arg3[%c15_25] : memref<100xf32, #tpu.memory_space<smem>>
    %c16_26 = arith.constant 16 : index
    %46 = memref.load %arg3[%c16_26] : memref<100xf32, #tpu.memory_space<smem>>
    %c17_27 = arith.constant 17 : index
    %47 = memref.load %arg3[%c17_27] : memref<100xf32, #tpu.memory_space<smem>>
    %c18_28 = arith.constant 18 : index
    %48 = memref.load %arg3[%c18_28] : memref<100xf32, #tpu.memory_space<smem>>
    %c19_29 = arith.constant 19 : index
    %49 = memref.load %arg3[%c19_29] : memref<100xf32, #tpu.memory_space<smem>>
    %c20 = arith.constant 20 : index
    %50 = memref.load %arg3[%c20] : memref<100xf32, #tpu.memory_space<smem>>
    %c21 = arith.constant 21 : index
    %51 = memref.load %arg3[%c21] : memref<100xf32, #tpu.memory_space<smem>>
    %c22 = arith.constant 22 : index
    %52 = memref.load %arg3[%c22] : memref<100xf32, #tpu.memory_space<smem>>
    %c23 = arith.constant 23 : index
    %53 = memref.load %arg3[%c23] : memref<100xf32, #tpu.memory_space<smem>>
    %c24 = arith.constant 24 : index
    %54 = memref.load %arg3[%c24] : memref<100xf32, #tpu.memory_space<smem>>
    %c25 = arith.constant 25 : index
    %55 = memref.load %arg3[%c25] : memref<100xf32, #tpu.memory_space<smem>>
    %c26 = arith.constant 26 : index
    %56 = memref.load %arg3[%c26] : memref<100xf32, #tpu.memory_space<smem>>
    %c27 = arith.constant 27 : index
    %57 = memref.load %arg3[%c27] : memref<100xf32, #tpu.memory_space<smem>>
    %c28 = arith.constant 28 : index
    %58 = memref.load %arg3[%c28] : memref<100xf32, #tpu.memory_space<smem>>
    %c29 = arith.constant 29 : index
    %59 = memref.load %arg3[%c29] : memref<100xf32, #tpu.memory_space<smem>>
    %c30 = arith.constant 30 : index
    %60 = memref.load %arg3[%c30] : memref<100xf32, #tpu.memory_space<smem>>
    %c31 = arith.constant 31 : index
    %61 = memref.load %arg3[%c31] : memref<100xf32, #tpu.memory_space<smem>>
    %c32 = arith.constant 32 : index
    %62 = memref.load %arg3[%c32] : memref<100xf32, #tpu.memory_space<smem>>
    %c33 = arith.constant 33 : index
    %63 = memref.load %arg3[%c33] : memref<100xf32, #tpu.memory_space<smem>>
    %c34 = arith.constant 34 : index
    %64 = memref.load %arg3[%c34] : memref<100xf32, #tpu.memory_space<smem>>
    %c35 = arith.constant 35 : index
    %65 = memref.load %arg3[%c35] : memref<100xf32, #tpu.memory_space<smem>>
    %c36 = arith.constant 36 : index
    %66 = memref.load %arg3[%c36] : memref<100xf32, #tpu.memory_space<smem>>
    %c37 = arith.constant 37 : index
    %67 = memref.load %arg3[%c37] : memref<100xf32, #tpu.memory_space<smem>>
    %c38 = arith.constant 38 : index
    %68 = memref.load %arg3[%c38] : memref<100xf32, #tpu.memory_space<smem>>
    %c39 = arith.constant 39 : index
    %69 = memref.load %arg3[%c39] : memref<100xf32, #tpu.memory_space<smem>>
    %c40 = arith.constant 40 : index
    %70 = memref.load %arg3[%c40] : memref<100xf32, #tpu.memory_space<smem>>
    %c41 = arith.constant 41 : index
    %71 = memref.load %arg3[%c41] : memref<100xf32, #tpu.memory_space<smem>>
    %c42 = arith.constant 42 : index
    %72 = memref.load %arg3[%c42] : memref<100xf32, #tpu.memory_space<smem>>
    %c43 = arith.constant 43 : index
    %73 = memref.load %arg3[%c43] : memref<100xf32, #tpu.memory_space<smem>>
    %c44 = arith.constant 44 : index
    %74 = memref.load %arg3[%c44] : memref<100xf32, #tpu.memory_space<smem>>
    %c45 = arith.constant 45 : index
    %75 = memref.load %arg3[%c45] : memref<100xf32, #tpu.memory_space<smem>>
    %c46 = arith.constant 46 : index
    %76 = memref.load %arg3[%c46] : memref<100xf32, #tpu.memory_space<smem>>
    %c47 = arith.constant 47 : index
    %77 = memref.load %arg3[%c47] : memref<100xf32, #tpu.memory_space<smem>>
    %c48 = arith.constant 48 : index
    %78 = memref.load %arg3[%c48] : memref<100xf32, #tpu.memory_space<smem>>
    %c49 = arith.constant 49 : index
    %79 = memref.load %arg3[%c49] : memref<100xf32, #tpu.memory_space<smem>>
    %c50 = arith.constant 50 : index
    %80 = memref.load %arg3[%c50] : memref<100xf32, #tpu.memory_space<smem>>
    %c51 = arith.constant 51 : index
    %81 = memref.load %arg3[%c51] : memref<100xf32, #tpu.memory_space<smem>>
    %c52 = arith.constant 52 : index
    %82 = memref.load %arg3[%c52] : memref<100xf32, #tpu.memory_space<smem>>
    %c53 = arith.constant 53 : index
    %83 = memref.load %arg3[%c53] : memref<100xf32, #tpu.memory_space<smem>>
    %c54 = arith.constant 54 : index
    %84 = memref.load %arg3[%c54] : memref<100xf32, #tpu.memory_space<smem>>
    %c55 = arith.constant 55 : index
    %85 = memref.load %arg3[%c55] : memref<100xf32, #tpu.memory_space<smem>>
    %c56 = arith.constant 56 : index
    %86 = memref.load %arg3[%c56] : memref<100xf32, #tpu.memory_space<smem>>
    %c57 = arith.constant 57 : index
    %87 = memref.load %arg3[%c57] : memref<100xf32, #tpu.memory_space<smem>>
    %c58 = arith.constant 58 : index
    %88 = memref.load %arg3[%c58] : memref<100xf32, #tpu.memory_space<smem>>
    %c59 = arith.constant 59 : index
    %89 = memref.load %arg3[%c59] : memref<100xf32, #tpu.memory_space<smem>>
    %c60 = arith.constant 60 : index
    %90 = memref.load %arg3[%c60] : memref<100xf32, #tpu.memory_space<smem>>
    %c61 = arith.constant 61 : index
    %91 = memref.load %arg3[%c61] : memref<100xf32, #tpu.memory_space<smem>>
    %c62 = arith.constant 62 : index
    %92 = memref.load %arg3[%c62] : memref<100xf32, #tpu.memory_space<smem>>
    %c63 = arith.constant 63 : index
    %93 = memref.load %arg3[%c63] : memref<100xf32, #tpu.memory_space<smem>>
    %c64 = arith.constant 64 : index
    %94 = memref.load %arg3[%c64] : memref<100xf32, #tpu.memory_space<smem>>
    %c65 = arith.constant 65 : index
    %95 = memref.load %arg3[%c65] : memref<100xf32, #tpu.memory_space<smem>>
    %c66 = arith.constant 66 : index
    %96 = memref.load %arg3[%c66] : memref<100xf32, #tpu.memory_space<smem>>
    %c67 = arith.constant 67 : index
    %97 = memref.load %arg3[%c67] : memref<100xf32, #tpu.memory_space<smem>>
    %c68 = arith.constant 68 : index
    %98 = memref.load %arg3[%c68] : memref<100xf32, #tpu.memory_space<smem>>
    %c69 = arith.constant 69 : index
    %99 = memref.load %arg3[%c69] : memref<100xf32, #tpu.memory_space<smem>>
    %c70 = arith.constant 70 : index
    %100 = memref.load %arg3[%c70] : memref<100xf32, #tpu.memory_space<smem>>
    %c71 = arith.constant 71 : index
    %101 = memref.load %arg3[%c71] : memref<100xf32, #tpu.memory_space<smem>>
    %c72 = arith.constant 72 : index
    %102 = memref.load %arg3[%c72] : memref<100xf32, #tpu.memory_space<smem>>
    %c73 = arith.constant 73 : index
    %103 = memref.load %arg3[%c73] : memref<100xf32, #tpu.memory_space<smem>>
    %c74 = arith.constant 74 : index
    %104 = memref.load %arg3[%c74] : memref<100xf32, #tpu.memory_space<smem>>
    %c75 = arith.constant 75 : index
    %105 = memref.load %arg3[%c75] : memref<100xf32, #tpu.memory_space<smem>>
    %c76 = arith.constant 76 : index
    %106 = memref.load %arg3[%c76] : memref<100xf32, #tpu.memory_space<smem>>
    %c77 = arith.constant 77 : index
    %107 = memref.load %arg3[%c77] : memref<100xf32, #tpu.memory_space<smem>>
    %c78 = arith.constant 78 : index
    %108 = memref.load %arg3[%c78] : memref<100xf32, #tpu.memory_space<smem>>
    %c79 = arith.constant 79 : index
    %109 = memref.load %arg3[%c79] : memref<100xf32, #tpu.memory_space<smem>>
    %c80 = arith.constant 80 : index
    %110 = memref.load %arg3[%c80] : memref<100xf32, #tpu.memory_space<smem>>
    %c81 = arith.constant 81 : index
    %111 = memref.load %arg3[%c81] : memref<100xf32, #tpu.memory_space<smem>>
    %c82 = arith.constant 82 : index
    %112 = memref.load %arg3[%c82] : memref<100xf32, #tpu.memory_space<smem>>
    %c83 = arith.constant 83 : index
    %113 = memref.load %arg3[%c83] : memref<100xf32, #tpu.memory_space<smem>>
    %c84 = arith.constant 84 : index
    %114 = memref.load %arg3[%c84] : memref<100xf32, #tpu.memory_space<smem>>
    %c85 = arith.constant 85 : index
    %115 = memref.load %arg3[%c85] : memref<100xf32, #tpu.memory_space<smem>>
    %c86 = arith.constant 86 : index
    %116 = memref.load %arg3[%c86] : memref<100xf32, #tpu.memory_space<smem>>
    %c87 = arith.constant 87 : index
    %117 = memref.load %arg3[%c87] : memref<100xf32, #tpu.memory_space<smem>>
    %c88 = arith.constant 88 : index
    %118 = memref.load %arg3[%c88] : memref<100xf32, #tpu.memory_space<smem>>
    %c89 = arith.constant 89 : index
    %119 = memref.load %arg3[%c89] : memref<100xf32, #tpu.memory_space<smem>>
    %c90 = arith.constant 90 : index
    %120 = memref.load %arg3[%c90] : memref<100xf32, #tpu.memory_space<smem>>
    %c91 = arith.constant 91 : index
    %121 = memref.load %arg3[%c91] : memref<100xf32, #tpu.memory_space<smem>>
    %c92 = arith.constant 92 : index
    %122 = memref.load %arg3[%c92] : memref<100xf32, #tpu.memory_space<smem>>
    %c93 = arith.constant 93 : index
    %123 = memref.load %arg3[%c93] : memref<100xf32, #tpu.memory_space<smem>>
    %c94 = arith.constant 94 : index
    %124 = memref.load %arg3[%c94] : memref<100xf32, #tpu.memory_space<smem>>
    %c95 = arith.constant 95 : index
    %125 = memref.load %arg3[%c95] : memref<100xf32, #tpu.memory_space<smem>>
    %c96 = arith.constant 96 : index
    %126 = memref.load %arg3[%c96] : memref<100xf32, #tpu.memory_space<smem>>
    %c97 = arith.constant 97 : index
    %127 = memref.load %arg3[%c97] : memref<100xf32, #tpu.memory_space<smem>>
    %c98 = arith.constant 98 : index
    %128 = memref.load %arg3[%c98] : memref<100xf32, #tpu.memory_space<smem>>
    %c99 = arith.constant 99 : index
    %129 = memref.load %arg3[%c99] : memref<100xf32, #tpu.memory_space<smem>>
    %c0_30 = arith.constant 0 : index
    %130 = memref.load %arg4[%c0_30] : memref<10xf32, #tpu.memory_space<smem>>
    %c1_31 = arith.constant 1 : index
    %131 = memref.load %arg4[%c1_31] : memref<10xf32, #tpu.memory_space<smem>>
    %c2_32 = arith.constant 2 : index
    %132 = memref.load %arg4[%c2_32] : memref<10xf32, #tpu.memory_space<smem>>
    %c3_33 = arith.constant 3 : index
    %133 = memref.load %arg4[%c3_33] : memref<10xf32, #tpu.memory_space<smem>>
    %c4_34 = arith.constant 4 : index
    %134 = memref.load %arg4[%c4_34] : memref<10xf32, #tpu.memory_space<smem>>
    %c5_35 = arith.constant 5 : index
    %135 = memref.load %arg4[%c5_35] : memref<10xf32, #tpu.memory_space<smem>>
    %c6_36 = arith.constant 6 : index
    %136 = memref.load %arg4[%c6_36] : memref<10xf32, #tpu.memory_space<smem>>
    %c7_37 = arith.constant 7 : index
    %137 = memref.load %arg4[%c7_37] : memref<10xf32, #tpu.memory_space<smem>>
    %c8_38 = arith.constant 8 : index
    %138 = memref.load %arg4[%c8_38] : memref<10xf32, #tpu.memory_space<smem>>
    %c9_39 = arith.constant 9 : index
    %139 = memref.load %arg4[%c9_39] : memref<10xf32, #tpu.memory_space<smem>>
    %c0_40 = arith.constant 0 : index
    %140 = memref.load %arg5[%c0_40] : memref<10xf32, #tpu.memory_space<smem>>
    %c1_41 = arith.constant 1 : index
    %141 = memref.load %arg5[%c1_41] : memref<10xf32, #tpu.memory_space<smem>>
    %c2_42 = arith.constant 2 : index
    %142 = memref.load %arg5[%c2_42] : memref<10xf32, #tpu.memory_space<smem>>
    %c3_43 = arith.constant 3 : index
    %143 = memref.load %arg5[%c3_43] : memref<10xf32, #tpu.memory_space<smem>>
    %c4_44 = arith.constant 4 : index
    %144 = memref.load %arg5[%c4_44] : memref<10xf32, #tpu.memory_space<smem>>
    %c5_45 = arith.constant 5 : index
    %145 = memref.load %arg5[%c5_45] : memref<10xf32, #tpu.memory_space<smem>>
    %c6_46 = arith.constant 6 : index
    %146 = memref.load %arg5[%c6_46] : memref<10xf32, #tpu.memory_space<smem>>
    %c7_47 = arith.constant 7 : index
    %147 = memref.load %arg5[%c7_47] : memref<10xf32, #tpu.memory_space<smem>>
    %c8_48 = arith.constant 8 : index
    %148 = memref.load %arg5[%c8_48] : memref<10xf32, #tpu.memory_space<smem>>
    %c9_49 = arith.constant 9 : index
    %149 = memref.load %arg5[%c9_49] : memref<10xf32, #tpu.memory_space<smem>>
    %c0_50 = arith.constant 0 : index
    %150 = memref.load %arg6[%c0_50] : memref<1xf32, #tpu.memory_space<smem>>
    %c0_i32 = arith.constant 0 : i32
    %c1_i32 = arith.constant 1 : i32
    %151 = arith.muli %c0_i32, %c1_i32 : i32
    %c0_i32_51 = arith.constant 0 : i32
    %152 = arith.addi %c0_i32_51, %151 : i32
    %c256_i32 = arith.constant 256 : i32
    %153 = arith.muli %152, %c256_i32 : i32
    %154 = tpu.assume_multiple %153, 256 : i32
    %c0_52 = arith.constant 0 : index
    %c0_53 = arith.constant 0 : index
    %155 = arith.index_cast %154 : i32 to index
    %156 = vector.load %arg7[%c0_52, %c0_53, %155] : memref<2x8x256xf32, #tpu.memory_space<vmem>>, vector<1x8x256xf32>
    %157 = vector.shape_cast %156 : vector<1x8x256xf32> to vector<8x256xf32>
    %c1_54 = arith.constant 1 : index
    %c0_55 = arith.constant 0 : index
    %158 = arith.index_cast %154 : i32 to index
    %159 = vector.load %arg7[%c1_54, %c0_55, %158] : memref<2x8x256xf32, #tpu.memory_space<vmem>>, vector<1x8x256xf32>
    %160 = vector.shape_cast %159 : vector<1x8x256xf32> to vector<8x256xf32>
    %161 = vector.broadcast %0 : f32 to vector<8x256xf32>
    %162 = arith.mulf %161, %157 : vector<8x256xf32>
    %163 = vector.broadcast %1 : f32 to vector<8x256xf32>
    %164 = arith.mulf %163, %160 : vector<8x256xf32>
    %165 = arith.addf %162, %164 : vector<8x256xf32>
    %166 = vector.broadcast %20 : f32 to vector<8x256xf32>
    %167 = arith.addf %165, %166 : vector<8x256xf32>
    %cst = arith.constant 0.000000e+00 : f32
    %168 = vector.broadcast %cst : f32 to vector<8x256xf32>
    %169 = arith.maximumf %167, %168 : vector<8x256xf32>
    %170 = vector.broadcast %2 : f32 to vector<8x256xf32>
    %171 = arith.mulf %170, %157 : vector<8x256xf32>
    %172 = vector.broadcast %3 : f32 to vector<8x256xf32>
    %173 = arith.mulf %172, %160 : vector<8x256xf32>
    %174 = arith.addf %171, %173 : vector<8x256xf32>
    %175 = vector.broadcast %21 : f32 to vector<8x256xf32>
    %176 = arith.addf %174, %175 : vector<8x256xf32>
    %cst_56 = arith.constant 0.000000e+00 : f32
    %177 = vector.broadcast %cst_56 : f32 to vector<8x256xf32>
    %178 = arith.maximumf %176, %177 : vector<8x256xf32>
    %179 = vector.broadcast %4 : f32 to vector<8x256xf32>
    %180 = arith.mulf %179, %157 : vector<8x256xf32>
    %181 = vector.broadcast %5 : f32 to vector<8x256xf32>
    %182 = arith.mulf %181, %160 : vector<8x256xf32>
    %183 = arith.addf %180, %182 : vector<8x256xf32>
    %184 = vector.broadcast %22 : f32 to vector<8x256xf32>
    %185 = arith.addf %183, %184 : vector<8x256xf32>
    %cst_57 = arith.constant 0.000000e+00 : f32
    %186 = vector.broadcast %cst_57 : f32 to vector<8x256xf32>
    %187 = arith.maximumf %185, %186 : vector<8x256xf32>
    %188 = vector.broadcast %6 : f32 to vector<8x256xf32>
    %189 = arith.mulf %188, %157 : vector<8x256xf32>
    %190 = vector.broadcast %7 : f32 to vector<8x256xf32>
    %191 = arith.mulf %190, %160 : vector<8x256xf32>
    %192 = arith.addf %189, %191 : vector<8x256xf32>
    %193 = vector.broadcast %23 : f32 to vector<8x256xf32>
    %194 = arith.addf %192, %193 : vector<8x256xf32>
    %cst_58 = arith.constant 0.000000e+00 : f32
    %195 = vector.broadcast %cst_58 : f32 to vector<8x256xf32>
    %196 = arith.maximumf %194, %195 : vector<8x256xf32>
    %197 = vector.broadcast %8 : f32 to vector<8x256xf32>
    %198 = arith.mulf %197, %157 : vector<8x256xf32>
    %199 = vector.broadcast %9 : f32 to vector<8x256xf32>
    %200 = arith.mulf %199, %160 : vector<8x256xf32>
    %201 = arith.addf %198, %200 : vector<8x256xf32>
    %202 = vector.broadcast %24 : f32 to vector<8x256xf32>
    %203 = arith.addf %201, %202 : vector<8x256xf32>
    %cst_59 = arith.constant 0.000000e+00 : f32
    %204 = vector.broadcast %cst_59 : f32 to vector<8x256xf32>
    %205 = arith.maximumf %203, %204 : vector<8x256xf32>
    %206 = vector.broadcast %10 : f32 to vector<8x256xf32>
    %207 = arith.mulf %206, %157 : vector<8x256xf32>
    %208 = vector.broadcast %11 : f32 to vector<8x256xf32>
    %209 = arith.mulf %208, %160 : vector<8x256xf32>
    %210 = arith.addf %207, %209 : vector<8x256xf32>
    %211 = vector.broadcast %25 : f32 to vector<8x256xf32>
    %212 = arith.addf %210, %211 : vector<8x256xf32>
    %cst_60 = arith.constant 0.000000e+00 : f32
    %213 = vector.broadcast %cst_60 : f32 to vector<8x256xf32>
    %214 = arith.maximumf %212, %213 : vector<8x256xf32>
    %215 = vector.broadcast %12 : f32 to vector<8x256xf32>
    %216 = arith.mulf %215, %157 : vector<8x256xf32>
    %217 = vector.broadcast %13 : f32 to vector<8x256xf32>
    %218 = arith.mulf %217, %160 : vector<8x256xf32>
    %219 = arith.addf %216, %218 : vector<8x256xf32>
    %220 = vector.broadcast %26 : f32 to vector<8x256xf32>
    %221 = arith.addf %219, %220 : vector<8x256xf32>
    %cst_61 = arith.constant 0.000000e+00 : f32
    %222 = vector.broadcast %cst_61 : f32 to vector<8x256xf32>
    %223 = arith.maximumf %221, %222 : vector<8x256xf32>
    %224 = vector.broadcast %14 : f32 to vector<8x256xf32>
    %225 = arith.mulf %224, %157 : vector<8x256xf32>
    %226 = vector.broadcast %15 : f32 to vector<8x256xf32>
    %227 = arith.mulf %226, %160 : vector<8x256xf32>
    %228 = arith.addf %225, %227 : vector<8x256xf32>
    %229 = vector.broadcast %27 : f32 to vector<8x256xf32>
    %230 = arith.addf %228, %229 : vector<8x256xf32>
    %cst_62 = arith.constant 0.000000e+00 : f32
    %231 = vector.broadcast %cst_62 : f32 to vector<8x256xf32>
    %232 = arith.maximumf %230, %231 : vector<8x256xf32>
    %233 = vector.broadcast %16 : f32 to vector<8x256xf32>
    %234 = arith.mulf %233, %157 : vector<8x256xf32>
    %235 = vector.broadcast %17 : f32 to vector<8x256xf32>
    %236 = arith.mulf %235, %160 : vector<8x256xf32>
    %237 = arith.addf %234, %236 : vector<8x256xf32>
    %238 = vector.broadcast %28 : f32 to vector<8x256xf32>
    %239 = arith.addf %237, %238 : vector<8x256xf32>
    %cst_63 = arith.constant 0.000000e+00 : f32
    %240 = vector.broadcast %cst_63 : f32 to vector<8x256xf32>
    %241 = arith.maximumf %239, %240 : vector<8x256xf32>
    %242 = vector.broadcast %18 : f32 to vector<8x256xf32>
    %243 = arith.mulf %242, %157 : vector<8x256xf32>
    %244 = vector.broadcast %19 : f32 to vector<8x256xf32>
    %245 = arith.mulf %244, %160 : vector<8x256xf32>
    %246 = arith.addf %243, %245 : vector<8x256xf32>
    %247 = vector.broadcast %29 : f32 to vector<8x256xf32>
    %248 = arith.addf %246, %247 : vector<8x256xf32>
    %cst_64 = arith.constant 0.000000e+00 : f32
    %249 = vector.broadcast %cst_64 : f32 to vector<8x256xf32>
    %250 = arith.maximumf %248, %249 : vector<8x256xf32>
    %251 = vector.broadcast %30 : f32 to vector<8x256xf32>
    %252 = arith.mulf %251, %169 : vector<8x256xf32>
    %253 = vector.broadcast %31 : f32 to vector<8x256xf32>
    %254 = arith.mulf %253, %178 : vector<8x256xf32>
    %255 = arith.addf %252, %254 : vector<8x256xf32>
    %256 = vector.broadcast %32 : f32 to vector<8x256xf32>
    %257 = arith.mulf %256, %187 : vector<8x256xf32>
    %258 = arith.addf %255, %257 : vector<8x256xf32>
    %259 = vector.broadcast %33 : f32 to vector<8x256xf32>
    %260 = arith.mulf %259, %196 : vector<8x256xf32>
    %261 = arith.addf %258, %260 : vector<8x256xf32>
    %262 = vector.broadcast %34 : f32 to vector<8x256xf32>
    %263 = arith.mulf %262, %205 : vector<8x256xf32>
    %264 = arith.addf %261, %263 : vector<8x256xf32>
    %265 = vector.broadcast %35 : f32 to vector<8x256xf32>
    %266 = arith.mulf %265, %214 : vector<8x256xf32>
    %267 = arith.addf %264, %266 : vector<8x256xf32>
    %268 = vector.broadcast %36 : f32 to vector<8x256xf32>
    %269 = arith.mulf %268, %223 : vector<8x256xf32>
    %270 = arith.addf %267, %269 : vector<8x256xf32>
    %271 = vector.broadcast %37 : f32 to vector<8x256xf32>
    %272 = arith.mulf %271, %232 : vector<8x256xf32>
    %273 = arith.addf %270, %272 : vector<8x256xf32>
    %274 = vector.broadcast %38 : f32 to vector<8x256xf32>
    %275 = arith.mulf %274, %241 : vector<8x256xf32>
    %276 = arith.addf %273, %275 : vector<8x256xf32>
    %277 = vector.broadcast %39 : f32 to vector<8x256xf32>
    %278 = arith.mulf %277, %250 : vector<8x256xf32>
    %279 = arith.addf %276, %278 : vector<8x256xf32>
    %280 = vector.broadcast %130 : f32 to vector<8x256xf32>
    %281 = arith.addf %279, %280 : vector<8x256xf32>
    %cst_65 = arith.constant 0.000000e+00 : f32
    %282 = vector.broadcast %cst_65 : f32 to vector<8x256xf32>
    %283 = arith.maximumf %281, %282 : vector<8x256xf32>
    %284 = vector.broadcast %140 : f32 to vector<8x256xf32>
    %285 = arith.mulf %284, %283 : vector<8x256xf32>
    %286 = vector.broadcast %40 : f32 to vector<8x256xf32>
    %287 = arith.mulf %286, %169 : vector<8x256xf32>
    %288 = vector.broadcast %41 : f32 to vector<8x256xf32>
    %289 = arith.mulf %288, %178 : vector<8x256xf32>
    %290 = arith.addf %287, %289 : vector<8x256xf32>
    %291 = vector.broadcast %42 : f32 to vector<8x256xf32>
    %292 = arith.mulf %291, %187 : vector<8x256xf32>
    %293 = arith.addf %290, %292 : vector<8x256xf32>
    %294 = vector.broadcast %43 : f32 to vector<8x256xf32>
    %295 = arith.mulf %294, %196 : vector<8x256xf32>
    %296 = arith.addf %293, %295 : vector<8x256xf32>
    %297 = vector.broadcast %44 : f32 to vector<8x256xf32>
    %298 = arith.mulf %297, %205 : vector<8x256xf32>
    %299 = arith.addf %296, %298 : vector<8x256xf32>
    %300 = vector.broadcast %45 : f32 to vector<8x256xf32>
    %301 = arith.mulf %300, %214 : vector<8x256xf32>
    %302 = arith.addf %299, %301 : vector<8x256xf32>
    %303 = vector.broadcast %46 : f32 to vector<8x256xf32>
    %304 = arith.mulf %303, %223 : vector<8x256xf32>
    %305 = arith.addf %302, %304 : vector<8x256xf32>
    %306 = vector.broadcast %47 : f32 to vector<8x256xf32>
    %307 = arith.mulf %306, %232 : vector<8x256xf32>
    %308 = arith.addf %305, %307 : vector<8x256xf32>
    %309 = vector.broadcast %48 : f32 to vector<8x256xf32>
    %310 = arith.mulf %309, %241 : vector<8x256xf32>
    %311 = arith.addf %308, %310 : vector<8x256xf32>
    %312 = vector.broadcast %49 : f32 to vector<8x256xf32>
    %313 = arith.mulf %312, %250 : vector<8x256xf32>
    %314 = arith.addf %311, %313 : vector<8x256xf32>
    %315 = vector.broadcast %131 : f32 to vector<8x256xf32>
    %316 = arith.addf %314, %315 : vector<8x256xf32>
    %cst_66 = arith.constant 0.000000e+00 : f32
    %317 = vector.broadcast %cst_66 : f32 to vector<8x256xf32>
    %318 = arith.maximumf %316, %317 : vector<8x256xf32>
    %319 = vector.broadcast %141 : f32 to vector<8x256xf32>
    %320 = arith.mulf %319, %318 : vector<8x256xf32>
    %321 = arith.addf %285, %320 : vector<8x256xf32>
    %322 = vector.broadcast %50 : f32 to vector<8x256xf32>
    %323 = arith.mulf %322, %169 : vector<8x256xf32>
    %324 = vector.broadcast %51 : f32 to vector<8x256xf32>
    %325 = arith.mulf %324, %178 : vector<8x256xf32>
    %326 = arith.addf %323, %325 : vector<8x256xf32>
    %327 = vector.broadcast %52 : f32 to vector<8x256xf32>
    %328 = arith.mulf %327, %187 : vector<8x256xf32>
    %329 = arith.addf %326, %328 : vector<8x256xf32>
    %330 = vector.broadcast %53 : f32 to vector<8x256xf32>
    %331 = arith.mulf %330, %196 : vector<8x256xf32>
    %332 = arith.addf %329, %331 : vector<8x256xf32>
    %333 = vector.broadcast %54 : f32 to vector<8x256xf32>
    %334 = arith.mulf %333, %205 : vector<8x256xf32>
    %335 = arith.addf %332, %334 : vector<8x256xf32>
    %336 = vector.broadcast %55 : f32 to vector<8x256xf32>
    %337 = arith.mulf %336, %214 : vector<8x256xf32>
    %338 = arith.addf %335, %337 : vector<8x256xf32>
    %339 = vector.broadcast %56 : f32 to vector<8x256xf32>
    %340 = arith.mulf %339, %223 : vector<8x256xf32>
    %341 = arith.addf %338, %340 : vector<8x256xf32>
    %342 = vector.broadcast %57 : f32 to vector<8x256xf32>
    %343 = arith.mulf %342, %232 : vector<8x256xf32>
    %344 = arith.addf %341, %343 : vector<8x256xf32>
    %345 = vector.broadcast %58 : f32 to vector<8x256xf32>
    %346 = arith.mulf %345, %241 : vector<8x256xf32>
    %347 = arith.addf %344, %346 : vector<8x256xf32>
    %348 = vector.broadcast %59 : f32 to vector<8x256xf32>
    %349 = arith.mulf %348, %250 : vector<8x256xf32>
    %350 = arith.addf %347, %349 : vector<8x256xf32>
    %351 = vector.broadcast %132 : f32 to vector<8x256xf32>
    %352 = arith.addf %350, %351 : vector<8x256xf32>
    %cst_67 = arith.constant 0.000000e+00 : f32
    %353 = vector.broadcast %cst_67 : f32 to vector<8x256xf32>
    %354 = arith.maximumf %352, %353 : vector<8x256xf32>
    %355 = vector.broadcast %142 : f32 to vector<8x256xf32>
    %356 = arith.mulf %355, %354 : vector<8x256xf32>
    %357 = arith.addf %321, %356 : vector<8x256xf32>
    %358 = vector.broadcast %60 : f32 to vector<8x256xf32>
    %359 = arith.mulf %358, %169 : vector<8x256xf32>
    %360 = vector.broadcast %61 : f32 to vector<8x256xf32>
    %361 = arith.mulf %360, %178 : vector<8x256xf32>
    %362 = arith.addf %359, %361 : vector<8x256xf32>
    %363 = vector.broadcast %62 : f32 to vector<8x256xf32>
    %364 = arith.mulf %363, %187 : vector<8x256xf32>
    %365 = arith.addf %362, %364 : vector<8x256xf32>
    %366 = vector.broadcast %63 : f32 to vector<8x256xf32>
    %367 = arith.mulf %366, %196 : vector<8x256xf32>
    %368 = arith.addf %365, %367 : vector<8x256xf32>
    %369 = vector.broadcast %64 : f32 to vector<8x256xf32>
    %370 = arith.mulf %369, %205 : vector<8x256xf32>
    %371 = arith.addf %368, %370 : vector<8x256xf32>
    %372 = vector.broadcast %65 : f32 to vector<8x256xf32>
    %373 = arith.mulf %372, %214 : vector<8x256xf32>
    %374 = arith.addf %371, %373 : vector<8x256xf32>
    %375 = vector.broadcast %66 : f32 to vector<8x256xf32>
    %376 = arith.mulf %375, %223 : vector<8x256xf32>
    %377 = arith.addf %374, %376 : vector<8x256xf32>
    %378 = vector.broadcast %67 : f32 to vector<8x256xf32>
    %379 = arith.mulf %378, %232 : vector<8x256xf32>
    %380 = arith.addf %377, %379 : vector<8x256xf32>
    %381 = vector.broadcast %68 : f32 to vector<8x256xf32>
    %382 = arith.mulf %381, %241 : vector<8x256xf32>
    %383 = arith.addf %380, %382 : vector<8x256xf32>
    %384 = vector.broadcast %69 : f32 to vector<8x256xf32>
    %385 = arith.mulf %384, %250 : vector<8x256xf32>
    %386 = arith.addf %383, %385 : vector<8x256xf32>
    %387 = vector.broadcast %133 : f32 to vector<8x256xf32>
    %388 = arith.addf %386, %387 : vector<8x256xf32>
    %cst_68 = arith.constant 0.000000e+00 : f32
    %389 = vector.broadcast %cst_68 : f32 to vector<8x256xf32>
    %390 = arith.maximumf %388, %389 : vector<8x256xf32>
    %391 = vector.broadcast %143 : f32 to vector<8x256xf32>
    %392 = arith.mulf %391, %390 : vector<8x256xf32>
    %393 = arith.addf %357, %392 : vector<8x256xf32>
    %394 = vector.broadcast %70 : f32 to vector<8x256xf32>
    %395 = arith.mulf %394, %169 : vector<8x256xf32>
    %396 = vector.broadcast %71 : f32 to vector<8x256xf32>
    %397 = arith.mulf %396, %178 : vector<8x256xf32>
    %398 = arith.addf %395, %397 : vector<8x256xf32>
    %399 = vector.broadcast %72 : f32 to vector<8x256xf32>
    %400 = arith.mulf %399, %187 : vector<8x256xf32>
    %401 = arith.addf %398, %400 : vector<8x256xf32>
    %402 = vector.broadcast %73 : f32 to vector<8x256xf32>
    %403 = arith.mulf %402, %196 : vector<8x256xf32>
    %404 = arith.addf %401, %403 : vector<8x256xf32>
    %405 = vector.broadcast %74 : f32 to vector<8x256xf32>
    %406 = arith.mulf %405, %205 : vector<8x256xf32>
    %407 = arith.addf %404, %406 : vector<8x256xf32>
    %408 = vector.broadcast %75 : f32 to vector<8x256xf32>
    %409 = arith.mulf %408, %214 : vector<8x256xf32>
    %410 = arith.addf %407, %409 : vector<8x256xf32>
    %411 = vector.broadcast %76 : f32 to vector<8x256xf32>
    %412 = arith.mulf %411, %223 : vector<8x256xf32>
    %413 = arith.addf %410, %412 : vector<8x256xf32>
    %414 = vector.broadcast %77 : f32 to vector<8x256xf32>
    %415 = arith.mulf %414, %232 : vector<8x256xf32>
    %416 = arith.addf %413, %415 : vector<8x256xf32>
    %417 = vector.broadcast %78 : f32 to vector<8x256xf32>
    %418 = arith.mulf %417, %241 : vector<8x256xf32>
    %419 = arith.addf %416, %418 : vector<8x256xf32>
    %420 = vector.broadcast %79 : f32 to vector<8x256xf32>
    %421 = arith.mulf %420, %250 : vector<8x256xf32>
    %422 = arith.addf %419, %421 : vector<8x256xf32>
    %423 = vector.broadcast %134 : f32 to vector<8x256xf32>
    %424 = arith.addf %422, %423 : vector<8x256xf32>
    %cst_69 = arith.constant 0.000000e+00 : f32
    %425 = vector.broadcast %cst_69 : f32 to vector<8x256xf32>
    %426 = arith.maximumf %424, %425 : vector<8x256xf32>
    %427 = vector.broadcast %144 : f32 to vector<8x256xf32>
    %428 = arith.mulf %427, %426 : vector<8x256xf32>
    %429 = arith.addf %393, %428 : vector<8x256xf32>
    %430 = vector.broadcast %80 : f32 to vector<8x256xf32>
    %431 = arith.mulf %430, %169 : vector<8x256xf32>
    %432 = vector.broadcast %81 : f32 to vector<8x256xf32>
    %433 = arith.mulf %432, %178 : vector<8x256xf32>
    %434 = arith.addf %431, %433 : vector<8x256xf32>
    %435 = vector.broadcast %82 : f32 to vector<8x256xf32>
    %436 = arith.mulf %435, %187 : vector<8x256xf32>
    %437 = arith.addf %434, %436 : vector<8x256xf32>
    %438 = vector.broadcast %83 : f32 to vector<8x256xf32>
    %439 = arith.mulf %438, %196 : vector<8x256xf32>
    %440 = arith.addf %437, %439 : vector<8x256xf32>
    %441 = vector.broadcast %84 : f32 to vector<8x256xf32>
    %442 = arith.mulf %441, %205 : vector<8x256xf32>
    %443 = arith.addf %440, %442 : vector<8x256xf32>
    %444 = vector.broadcast %85 : f32 to vector<8x256xf32>
    %445 = arith.mulf %444, %214 : vector<8x256xf32>
    %446 = arith.addf %443, %445 : vector<8x256xf32>
    %447 = vector.broadcast %86 : f32 to vector<8x256xf32>
    %448 = arith.mulf %447, %223 : vector<8x256xf32>
    %449 = arith.addf %446, %448 : vector<8x256xf32>
    %450 = vector.broadcast %87 : f32 to vector<8x256xf32>
    %451 = arith.mulf %450, %232 : vector<8x256xf32>
    %452 = arith.addf %449, %451 : vector<8x256xf32>
    %453 = vector.broadcast %88 : f32 to vector<8x256xf32>
    %454 = arith.mulf %453, %241 : vector<8x256xf32>
    %455 = arith.addf %452, %454 : vector<8x256xf32>
    %456 = vector.broadcast %89 : f32 to vector<8x256xf32>
    %457 = arith.mulf %456, %250 : vector<8x256xf32>
    %458 = arith.addf %455, %457 : vector<8x256xf32>
    %459 = vector.broadcast %135 : f32 to vector<8x256xf32>
    %460 = arith.addf %458, %459 : vector<8x256xf32>
    %cst_70 = arith.constant 0.000000e+00 : f32
    %461 = vector.broadcast %cst_70 : f32 to vector<8x256xf32>
    %462 = arith.maximumf %460, %461 : vector<8x256xf32>
    %463 = vector.broadcast %145 : f32 to vector<8x256xf32>
    %464 = arith.mulf %463, %462 : vector<8x256xf32>
    %465 = arith.addf %429, %464 : vector<8x256xf32>
    %466 = vector.broadcast %90 : f32 to vector<8x256xf32>
    %467 = arith.mulf %466, %169 : vector<8x256xf32>
    %468 = vector.broadcast %91 : f32 to vector<8x256xf32>
    %469 = arith.mulf %468, %178 : vector<8x256xf32>
    %470 = arith.addf %467, %469 : vector<8x256xf32>
    %471 = vector.broadcast %92 : f32 to vector<8x256xf32>
    %472 = arith.mulf %471, %187 : vector<8x256xf32>
    %473 = arith.addf %470, %472 : vector<8x256xf32>
    %474 = vector.broadcast %93 : f32 to vector<8x256xf32>
    %475 = arith.mulf %474, %196 : vector<8x256xf32>
    %476 = arith.addf %473, %475 : vector<8x256xf32>
    %477 = vector.broadcast %94 : f32 to vector<8x256xf32>
    %478 = arith.mulf %477, %205 : vector<8x256xf32>
    %479 = arith.addf %476, %478 : vector<8x256xf32>
    %480 = vector.broadcast %95 : f32 to vector<8x256xf32>
    %481 = arith.mulf %480, %214 : vector<8x256xf32>
    %482 = arith.addf %479, %481 : vector<8x256xf32>
    %483 = vector.broadcast %96 : f32 to vector<8x256xf32>
    %484 = arith.mulf %483, %223 : vector<8x256xf32>
    %485 = arith.addf %482, %484 : vector<8x256xf32>
    %486 = vector.broadcast %97 : f32 to vector<8x256xf32>
    %487 = arith.mulf %486, %232 : vector<8x256xf32>
    %488 = arith.addf %485, %487 : vector<8x256xf32>
    %489 = vector.broadcast %98 : f32 to vector<8x256xf32>
    %490 = arith.mulf %489, %241 : vector<8x256xf32>
    %491 = arith.addf %488, %490 : vector<8x256xf32>
    %492 = vector.broadcast %99 : f32 to vector<8x256xf32>
    %493 = arith.mulf %492, %250 : vector<8x256xf32>
    %494 = arith.addf %491, %493 : vector<8x256xf32>
    %495 = vector.broadcast %136 : f32 to vector<8x256xf32>
    %496 = arith.addf %494, %495 : vector<8x256xf32>
    %cst_71 = arith.constant 0.000000e+00 : f32
    %497 = vector.broadcast %cst_71 : f32 to vector<8x256xf32>
    %498 = arith.maximumf %496, %497 : vector<8x256xf32>
    %499 = vector.broadcast %146 : f32 to vector<8x256xf32>
    %500 = arith.mulf %499, %498 : vector<8x256xf32>
    %501 = arith.addf %465, %500 : vector<8x256xf32>
    %502 = vector.broadcast %100 : f32 to vector<8x256xf32>
    %503 = arith.mulf %502, %169 : vector<8x256xf32>
    %504 = vector.broadcast %101 : f32 to vector<8x256xf32>
    %505 = arith.mulf %504, %178 : vector<8x256xf32>
    %506 = arith.addf %503, %505 : vector<8x256xf32>
    %507 = vector.broadcast %102 : f32 to vector<8x256xf32>
    %508 = arith.mulf %507, %187 : vector<8x256xf32>
    %509 = arith.addf %506, %508 : vector<8x256xf32>
    %510 = vector.broadcast %103 : f32 to vector<8x256xf32>
    %511 = arith.mulf %510, %196 : vector<8x256xf32>
    %512 = arith.addf %509, %511 : vector<8x256xf32>
    %513 = vector.broadcast %104 : f32 to vector<8x256xf32>
    %514 = arith.mulf %513, %205 : vector<8x256xf32>
    %515 = arith.addf %512, %514 : vector<8x256xf32>
    %516 = vector.broadcast %105 : f32 to vector<8x256xf32>
    %517 = arith.mulf %516, %214 : vector<8x256xf32>
    %518 = arith.addf %515, %517 : vector<8x256xf32>
    %519 = vector.broadcast %106 : f32 to vector<8x256xf32>
    %520 = arith.mulf %519, %223 : vector<8x256xf32>
    %521 = arith.addf %518, %520 : vector<8x256xf32>
    %522 = vector.broadcast %107 : f32 to vector<8x256xf32>
    %523 = arith.mulf %522, %232 : vector<8x256xf32>
    %524 = arith.addf %521, %523 : vector<8x256xf32>
    %525 = vector.broadcast %108 : f32 to vector<8x256xf32>
    %526 = arith.mulf %525, %241 : vector<8x256xf32>
    %527 = arith.addf %524, %526 : vector<8x256xf32>
    %528 = vector.broadcast %109 : f32 to vector<8x256xf32>
    %529 = arith.mulf %528, %250 : vector<8x256xf32>
    %530 = arith.addf %527, %529 : vector<8x256xf32>
    %531 = vector.broadcast %137 : f32 to vector<8x256xf32>
    %532 = arith.addf %530, %531 : vector<8x256xf32>
    %cst_72 = arith.constant 0.000000e+00 : f32
    %533 = vector.broadcast %cst_72 : f32 to vector<8x256xf32>
    %534 = arith.maximumf %532, %533 : vector<8x256xf32>
    %535 = vector.broadcast %147 : f32 to vector<8x256xf32>
    %536 = arith.mulf %535, %534 : vector<8x256xf32>
    %537 = arith.addf %501, %536 : vector<8x256xf32>
    %538 = vector.broadcast %110 : f32 to vector<8x256xf32>
    %539 = arith.mulf %538, %169 : vector<8x256xf32>
    %540 = vector.broadcast %111 : f32 to vector<8x256xf32>
    %541 = arith.mulf %540, %178 : vector<8x256xf32>
    %542 = arith.addf %539, %541 : vector<8x256xf32>
    %543 = vector.broadcast %112 : f32 to vector<8x256xf32>
    %544 = arith.mulf %543, %187 : vector<8x256xf32>
    %545 = arith.addf %542, %544 : vector<8x256xf32>
    %546 = vector.broadcast %113 : f32 to vector<8x256xf32>
    %547 = arith.mulf %546, %196 : vector<8x256xf32>
    %548 = arith.addf %545, %547 : vector<8x256xf32>
    %549 = vector.broadcast %114 : f32 to vector<8x256xf32>
    %550 = arith.mulf %549, %205 : vector<8x256xf32>
    %551 = arith.addf %548, %550 : vector<8x256xf32>
    %552 = vector.broadcast %115 : f32 to vector<8x256xf32>
    %553 = arith.mulf %552, %214 : vector<8x256xf32>
    %554 = arith.addf %551, %553 : vector<8x256xf32>
    %555 = vector.broadcast %116 : f32 to vector<8x256xf32>
    %556 = arith.mulf %555, %223 : vector<8x256xf32>
    %557 = arith.addf %554, %556 : vector<8x256xf32>
    %558 = vector.broadcast %117 : f32 to vector<8x256xf32>
    %559 = arith.mulf %558, %232 : vector<8x256xf32>
    %560 = arith.addf %557, %559 : vector<8x256xf32>
    %561 = vector.broadcast %118 : f32 to vector<8x256xf32>
    %562 = arith.mulf %561, %241 : vector<8x256xf32>
    %563 = arith.addf %560, %562 : vector<8x256xf32>
    %564 = vector.broadcast %119 : f32 to vector<8x256xf32>
    %565 = arith.mulf %564, %250 : vector<8x256xf32>
    %566 = arith.addf %563, %565 : vector<8x256xf32>
    %567 = vector.broadcast %138 : f32 to vector<8x256xf32>
    %568 = arith.addf %566, %567 : vector<8x256xf32>
    %cst_73 = arith.constant 0.000000e+00 : f32
    %569 = vector.broadcast %cst_73 : f32 to vector<8x256xf32>
    %570 = arith.maximumf %568, %569 : vector<8x256xf32>
    %571 = vector.broadcast %148 : f32 to vector<8x256xf32>
    %572 = arith.mulf %571, %570 : vector<8x256xf32>
    %573 = arith.addf %537, %572 : vector<8x256xf32>
    %574 = vector.broadcast %120 : f32 to vector<8x256xf32>
    %575 = arith.mulf %574, %169 : vector<8x256xf32>
    %576 = vector.broadcast %121 : f32 to vector<8x256xf32>
    %577 = arith.mulf %576, %178 : vector<8x256xf32>
    %578 = arith.addf %575, %577 : vector<8x256xf32>
    %579 = vector.broadcast %122 : f32 to vector<8x256xf32>
    %580 = arith.mulf %579, %187 : vector<8x256xf32>
    %581 = arith.addf %578, %580 : vector<8x256xf32>
    %582 = vector.broadcast %123 : f32 to vector<8x256xf32>
    %583 = arith.mulf %582, %196 : vector<8x256xf32>
    %584 = arith.addf %581, %583 : vector<8x256xf32>
    %585 = vector.broadcast %124 : f32 to vector<8x256xf32>
    %586 = arith.mulf %585, %205 : vector<8x256xf32>
    %587 = arith.addf %584, %586 : vector<8x256xf32>
    %588 = vector.broadcast %125 : f32 to vector<8x256xf32>
    %589 = arith.mulf %588, %214 : vector<8x256xf32>
    %590 = arith.addf %587, %589 : vector<8x256xf32>
    %591 = vector.broadcast %126 : f32 to vector<8x256xf32>
    %592 = arith.mulf %591, %223 : vector<8x256xf32>
    %593 = arith.addf %590, %592 : vector<8x256xf32>
    %594 = vector.broadcast %127 : f32 to vector<8x256xf32>
    %595 = arith.mulf %594, %232 : vector<8x256xf32>
    %596 = arith.addf %593, %595 : vector<8x256xf32>
    %597 = vector.broadcast %128 : f32 to vector<8x256xf32>
    %598 = arith.mulf %597, %241 : vector<8x256xf32>
    %599 = arith.addf %596, %598 : vector<8x256xf32>
    %600 = vector.broadcast %129 : f32 to vector<8x256xf32>
    %601 = arith.mulf %600, %250 : vector<8x256xf32>
    %602 = arith.addf %599, %601 : vector<8x256xf32>
    %603 = vector.broadcast %139 : f32 to vector<8x256xf32>
    %604 = arith.addf %602, %603 : vector<8x256xf32>
    %cst_74 = arith.constant 0.000000e+00 : f32
    %605 = vector.broadcast %cst_74 : f32 to vector<8x256xf32>
    %606 = arith.maximumf %604, %605 : vector<8x256xf32>
    %607 = vector.broadcast %149 : f32 to vector<8x256xf32>
    %608 = arith.mulf %607, %606 : vector<8x256xf32>
    %609 = arith.addf %573, %608 : vector<8x256xf32>
    %610 = vector.broadcast %150 : f32 to vector<8x256xf32>
    %611 = arith.addf %609, %610 : vector<8x256xf32>
    %c0_75 = arith.constant 0 : index
    %612 = arith.index_cast %154 : i32 to index
    %613 = vector.load %arg8[%c0_75, %612] : memref<8x256xf32, #tpu.memory_space<vmem>>, vector<8x256xf32>
    tpu.vector_store %arg8[%c0_75, %612], %611 {strides = array<i32>} : memref<8x256xf32, #tpu.memory_space<vmem>>, vector<8x256xf32>,
    %c1_i32_76 = arith.constant 1 : i32
    return
  }
  func.func @transform_0(%arg0: i32) -> i32 {
    %c0_i32 = arith.constant 0 : i32
    %c0_i32_0 = arith.constant 0 : i32
    return %c0_i32 : i32
  }
  func.func @transform_1(%arg0: i32) -> i32 {
    %c0_i32 = arith.constant 0 : i32
    %c0_i32_0 = arith.constant 0 : i32
    return %c0_i32 : i32
  }
  func.func @transform_2(%arg0: i32) -> i32 {
    %c0_i32 = arith.constant 0 : i32
    %c0_i32_0 = arith.constant 0 : i32
    return %c0_i32 : i32
  }
  func.func @transform_3(%arg0: i32) -> i32 {
    %c0_i32 = arith.constant 0 : i32
    %c0_i32_0 = arith.constant 0 : i32
    return %c0_i32 : i32
  }
  func.func @transform_4(%arg0: i32) -> i32 {
    %c0_i32 = arith.constant 0 : i32
    %c0_i32_0 = arith.constant 0 : i32
    return %c0_i32 : i32
  }
  func.func @transform_5(%arg0: i32) -> i32 {
    %c0_i32 = arith.constant 0 : i32
    %c0_i32_0 = arith.constant 0 : i32
    return %c0_i32 : i32
  }
  func.func @transform_6(%arg0: i32) -> (i32, i32, i32) {
    %c0_i32 = arith.constant 0 : i32
    %c0_i32_0 = arith.constant 0 : i32
    %c0_i32_1 = arith.constant 0 : i32
    return %c0_i32, %arg0, %c0_i32_0 : i32, i32, i32
  }
  func.func @transform_7(%arg0: i32) -> (i32, i32) {
    %c0_i32 = arith.constant 0 : i32
    %c0_i32_0 = arith.constant 0 : i32
    return %arg0, %c0_i32 : i32, i32
  }
}

</mosaic_0001>

<llo_original>
// kernel: circle_model_v4.1
$region0: #{circle_model_v4.1}
  #allocation0 [shape = 'u32[]', space=smem, size = 0x4, offset = 0x4, fixed_abs, tag = 'smem constant byte address 0x4 - core index']
  #allocation1 [shape = 'u32[144,128]{1,0:T(1,128)}', space=vmem, size = 0x12000, scoped, tag = 'internal scratch']
  #allocation2 [shape = 'f32[1]{0:T(128)S(6)}', space=smem, size = 0x200, scoped, tag = 'scoped memory for circle_model_v4.1']
  %s0 = inlined_call_operand.vmem [shape: f32[20], index: 0, kind: input, shape index: {}]
  %s1 = inlined_call_operand.vmem [shape: f32[10], index: 1, kind: input, shape index: {}]
  %s2 = inlined_call_operand.vmem [shape: f32[100], index: 2, kind: input, shape index: {}]
  %s3 = inlined_call_operand.vmem [shape: f32[10], index: 3, kind: input, shape index: {}]
  %s4 = inlined_call_operand.vmem [shape: f32[10], index: 4, kind: input, shape index: {}]
  %s5 = inlined_call_operand.<no memory space> [shape: f32[1], index: 5, kind: input, shape index: {}]
  %s6 = inlined_call_operand.vmem [shape: f32[2,8,256], index: 6, kind: input, shape index: {}]
  %s7 = inlined_call_operand.vmem [shape: f32[8,256], index: 7, kind: output, shape index: {}]
  %s8 = sld [smem:[#allocation0]]
  $region58: #{circle_model_v4.1} parent=0
    _
  %s10 = ssub.s32 1, %s8
  %s11 = scalar_select 0, %s10, %s8
  %12 = sst [smem:[#allocation2]] %s5
  $region1: #{circle_model_v4.1} parent=0
    #allocation3 [shape = 'u8[512]{0}', space=smem, size = 0x200, scoped, tag = 'input window, operand 0, single buffered']
    #allocation4 [shape = 's32[1]{0}', space=sflag, size = 0x4, scoped, tag = 'scoped memory for circle_model_v4.1']
    #allocation5 [shape = 'u8[512]{0}', space=smem, size = 0x200, scoped, tag = 'input window, operand 1, single buffered']
    #allocation6 [shape = 's32[1]{0}', space=sflag, size = 0x4, scoped, tag = 'scoped memory for circle_model_v4.1']
    #allocation7 [shape = 'u8[512]{0}', space=smem, size = 0x200, scoped, tag = 'input window, operand 2, single buffered']
    #allocation8 [shape = 'u8[512]{0}', space=smem, size = 0x200, scoped, tag = 'input window, operand 3, single buffered']
    #allocation9 [shape = 's32[1]{0}', space=sflag, size = 0x4, scoped, tag = 'scoped memory for circle_model_v4.1']
    #allocation10 [shape = 'u8[512]{0}', space=smem, size = 0x200, scoped, tag = 'input window, operand 4, single buffered']
    %13 = vsyncpa [#allocation4], 0
    %14 = vsyncpa [#allocation6], 0
    %15 = vsyncpa [#allocation9], 0
    // Predicated region
    $region2: #{circle_model_v4.1} parent=1 // pred_check
      _
    $region3: #{circle_model_v4.1} parent=1 // pred_check_branch
      %17 = sbr.rel (0) target = $region5
    $region4: #{circle_model_v4.1} parent=1 // pred_region
      %s19 = ssub.s32 16, 16
      %20 = vsyncadd [#allocation4], %s19
      %s22 = sshll.u32 %s0, 4
      %s23 = int_to_ptr.vmem [resolvable:$true] %s22
      %25 = dma.vmem_to_smem %s23, 16, [#allocation3], [#allocation4]
    $region5: #{circle_model_v4.1} parent=1 // pred_fallthru
      _
    // Predicated region
    $region6: #{circle_model_v4.1} parent=1 // pred_check
      _
    $region7: #{circle_model_v4.1} parent=1 // pred_check_branch
      %27 = sbr.rel (0) target = $region9
    $region8: #{circle_model_v4.1} parent=1 // pred_region
      %s29 = ssub.s32 16, 16
      %30 = vsyncadd [#allocation6], %s29
      %s32 = sshll.u32 %s1, 4
      %s33 = int_to_ptr.vmem [resolvable:$true] %s32
      %35 = dma.vmem_to_smem %s33, 16, [#allocation5], [#allocation6]
    $region9: #{circle_model_v4.1} parent=1 // pred_fallthru
      _
    // Predicated region
    $region10: #{circle_model_v4.1} parent=1 // pred_check
      _
    $region11: #{circle_model_v4.1} parent=1 // pred_check_branch
      %37 = sbr.rel (0) target = $region13
    $region12: #{circle_model_v4.1} parent=1 // pred_region
      %s39 = ssub.s32 16, 16
      %40 = vsyncadd [#allocation6], %s39
      %s42 = sshll.u32 %s2, 4
      %s43 = int_to_ptr.vmem [resolvable:$true] %s42
      %45 = dma.vmem_to_smem %s43, 16, [#allocation7], [#allocation6]
    $region13: #{circle_model_v4.1} parent=1 // pred_fallthru
      _
    // Predicated region
    $region14: #{circle_model_v4.1} parent=1 // pred_check
      _
    $region15: #{circle_model_v4.1} parent=1 // pred_check_branch
      %47 = sbr.rel (0) target = $region17
    $region16: #{circle_model_v4.1} parent=1 // pred_region
      %s49 = ssub.s32 16, 16
      %50 = vsyncadd [#allocation9], %s49
      %s52 = sshll.u32 %s3, 4
      %s53 = int_to_ptr.vmem [resolvable:$true] %s52
      %55 = dma.vmem_to_smem %s53, 16, [#allocation8], [#allocation9]
    $region17: #{circle_model_v4.1} parent=1 // pred_fallthru
      _
    // Predicated region
    $region18: #{circle_model_v4.1} parent=1 // pred_check
      _
    $region19: #{circle_model_v4.1} parent=1 // pred_check_branch
      %57 = sbr.rel (0) target = $region21
    $region20: #{circle_model_v4.1} parent=1 // pred_region
      %s59 = ssub.s32 16, 16
      %60 = vsyncadd [#allocation9], %s59
      %s62 = sshll.u32 %s4, 4
      %s63 = int_to_ptr.vmem [resolvable:$true] %s62
      %65 = dma.vmem_to_smem %s63, 16, [#allocation10], [#allocation9]
    $region21: #{circle_model_v4.1} parent=1 // pred_fallthru
      _
    // Predicated region
    $region22: #{circle_model_v4.1} parent=1 // pred_check
      _
    $region23: #{circle_model_v4.1} parent=1 // pred_check_branch
      %67 = sbr.rel (0) target = $region25
    $region24: #{circle_model_v4.1} parent=1 // pred_region
      _
    $region25: #{circle_model_v4.1} parent=1 // pred_fallthru
      _
    // Predicated region
    $region26: #{circle_model_v4.1} parent=1 // pred_check
      _
    $region27: #{circle_model_v4.1} parent=1 // pred_check_branch
      %69 = sbr.rel (0) target = $region29
    $region28: #{circle_model_v4.1} parent=1 // pred_region
      _
    $region29: #{circle_model_v4.1} parent=1 // pred_fallthru
      _
    // Predicated region
    $region30: #{circle_model_v4.1} parent=1 // pred_check
      _
    $region31: #{circle_model_v4.1} parent=1 // pred_check_branch
      %71 = sbr.rel (0) target = $region33
    $region32: #{circle_model_v4.1} parent=1 // pred_region
      %72 = dma.done [#allocation4], 16
    $region33: #{circle_model_v4.1} parent=1 // pred_fallthru
      _
    // Predicated region
    $region34: #{circle_model_v4.1} parent=1 // pred_check
      _
    $region35: #{circle_model_v4.1} parent=1 // pred_check_branch
      %74 = sbr.rel (0) target = $region37
    $region36: #{circle_model_v4.1} parent=1 // pred_region
      %75 = dma.done [#allocation6], 16
    $region37: #{circle_model_v4.1} parent=1 // pred_fallthru
      _
    // Predicated region
    $region38: #{circle_model_v4.1} parent=1 // pred_check
      _
    $region39: #{circle_model_v4.1} parent=1 // pred_check_branch
      %77 = sbr.rel (0) target = $region41
    $region40: #{circle_model_v4.1} parent=1 // pred_region
      %78 = dma.done [#allocation6], 16
    $region41: #{circle_model_v4.1} parent=1 // pred_fallthru
      _
    // Predicated region
    $region42: #{circle_model_v4.1} parent=1 // pred_check
      _
    $region43: #{circle_model_v4.1} parent=1 // pred_check_branch
      %80 = sbr.rel (0) target = $region45
    $region44: #{circle_model_v4.1} parent=1 // pred_region
      %81 = dma.done [#allocation9], 16
    $region45: #{circle_model_v4.1} parent=1 // pred_fallthru
      _
    // Predicated region
    $region46: #{circle_model_v4.1} parent=1 // pred_check
      _
    $region47: #{circle_model_v4.1} parent=1 // pred_check_branch
      %83 = sbr.rel (0) target = $region49
    $region48: #{circle_model_v4.1} parent=1 // pred_region
      %84 = dma.done [#allocation9], 16
    $region49: #{circle_model_v4.1} parent=1 // pred_fallthru
      _
    %85 = sfence
    %s86 = sld [smem:[#allocation3]]
    %s87 = sld [smem:[#allocation3 + $0x1]]
    %s88 = sld [smem:[#allocation3 + $0x2]]
    %s89 = sld [smem:[#allocation3 + $0x3]]
    %s90 = sld [smem:[#allocation3 + $0x4]]
    %s91 = sld [smem:[#allocation3 + $0x5]]
    %s92 = sld [smem:[#allocation3 + $0x6]]
    %s93 = sld [smem:[#allocation3 + $0x7]]
    %s94 = sld [smem:[#allocation3 + $0x8]]
    %s95 = sld [smem:[#allocation3 + $0x9]]
    %s96 = sld [smem:[#allocation3 + $0xa]]
    %s97 = sld [smem:[#allocation3 + $0xb]]
    %s98 = sld [smem:[#allocation3 + $0xc]]
    %s99 = sld [smem:[#allocation3 + $0xd]]
    %s100 = sld [smem:[#allocation3 + $0xe]]
    %s101 = sld [smem:[#allocation3 + $0xf]]
    %s102 = sld [smem:[#allocation3 + $0x10]]
    %s103 = sld [smem:[#allocation3 + $0x11]]
    %s104 = sld [smem:[#allocation3 + $0x12]]
    %s105 = sld [smem:[#allocation3 + $0x13]]
    %s106 = sld [smem:[#allocation5]]
    %s107 = sld [smem:[#allocation5 + $0x1]]
    %s108 = sld [smem:[#allocation5 + $0x2]]
    %s109 = sld [smem:[#allocation5 + $0x3]]
    %s110 = sld [smem:[#allocation5 + $0x4]]
    %s111 = sld [smem:[#allocation5 + $0x5]]
    %s112 = sld [smem:[#allocation5 + $0x6]]
    %s113 = sld [smem:[#allocation5 + $0x7]]
    %s114 = sld [smem:[#allocation5 + $0x8]]
    %s115 = sld [smem:[#allocation5 + $0x9]]
    %s116 = sld [smem:[#allocation7]]
    %s117 = sld [smem:[#allocation7 + $0x1]]
    %s118 = sld [smem:[#allocation7 + $0x2]]
    %s119 = sld [smem:[#allocation7 + $0x3]]
    %s120 = sld [smem:[#allocation7 + $0x4]]
    %s121 = sld [smem:[#allocation7 + $0x5]]
    %s122 = sld [smem:[#allocation7 + $0x6]]
    %s123 = sld [smem:[#allocation7 + $0x7]]
    %s124 = sld [smem:[#allocation7 + $0x8]]
    %s125 = sld [smem:[#allocation7 + $0x9]]
    %s126 = sld [smem:[#allocation7 + $0xa]]
    %s127 = sld [smem:[#allocation7 + $0xb]]
    %s128 = sld [smem:[#allocation7 + $0xc]]
    %s129 = sld [smem:[#allocation7 + $0xd]]
    %s130 = sld [smem:[#allocation7 + $0xe]]
    %s131 = sld [smem:[#allocation7 + $0xf]]
    %s132 = sld [smem:[#allocation7 + $0x10]]
    %s133 = sld [smem:[#allocation7 + $0x11]]
    %s134 = sld [smem:[#allocation7 + $0x12]]
    %s135 = sld [smem:[#allocation7 + $0x13]]
    %s136 = sld [smem:[#allocation7 + $0x14]]
    %s137 = sld [smem:[#allocation7 + $0x15]]
    %s138 = sld [smem:[#allocation7 + $0x16]]
    %s139 = sld [smem:[#allocation7 + $0x17]]
    %s140 = sld [smem:[#allocation7 + $0x18]]
    %s141 = sld [smem:[#allocation7 + $0x19]]
    %s142 = sld [smem:[#allocation7 + $0x1a]]
    %s143 = sld [smem:[#allocation7 + $0x1b]]
    %s144 = sld [smem:[#allocation7 + $0x1c]]
    %s145 = sld [smem:[#allocation7 + $0x1d]]
    %s146 = sld [smem:[#allocation7 + $0x1e]]
    %s147 = sld [smem:[#allocation7 + $0x1f]]
    %s148 = sld [smem:[#allocation7 + $0x20]]
    %s149 = sld [smem:[#allocation7 + $0x21]]
    %s150 = sld [smem:[#allocation7 + $0x22]]
    %s151 = sld [smem:[#allocation7 + $0x23]]
    %s152 = sld [smem:[#allocation7 + $0x24]]
    %s153 = sld [smem:[#allocation7 + $0x25]]
    %s154 = sld [smem:[#allocation7 + $0x26]]
    %s155 = sld [smem:[#allocation7 + $0x27]]
    %s156 = sld [smem:[#allocation7 + $0x28]]
    %s157 = sld [smem:[#allocation7 + $0x29]]
    %s158 = sld [smem:[#allocation7 + $0x2a]]
    %s159 = sld [smem:[#allocation7 + $0x2b]]
    %s160 = sld [smem:[#allocation7 + $0x2c]]
    %s161 = sld [smem:[#allocation7 + $0x2d]]
    %s162 = sld [smem:[#allocation7 + $0x2e]]
    %s163 = sld [smem:[#allocation7 + $0x2f]]
    %s164 = sld [smem:[#allocation7 + $0x30]]
    %s165 = sld [smem:[#allocation7 + $0x31]]
    %s166 = sld [smem:[#allocation7 + $0x32]]
    %s167 = sld [smem:[#allocation7 + $0x33]]
    %s168 = sld [smem:[#allocation7 + $0x34]]
    %s169 = sld [smem:[#allocation7 + $0x35]]
    %s170 = sld [smem:[#allocation7 + $0x36]]
    %s171 = sld [smem:[#allocation7 + $0x37]]
    %s172 = sld [smem:[#allocation7 + $0x38]]
    %s173 = sld [smem:[#allocation7 + $0x39]]
    %s174 = sld [smem:[#allocation7 + $0x3a]]
    %s175 = sld [smem:[#allocation7 + $0x3b]]
    %s176 = sld [smem:[#allocation7 + $0x3c]]
    %s177 = sld [smem:[#allocation7 + $0x3d]]
    %s178 = sld [smem:[#allocation7 + $0x3e]]
    %s179 = sld [smem:[#allocation7 + $0x3f]]
    %s180 = sld [smem:[#allocation7 + $0x40]]
    %s181 = sld [smem:[#allocation7 + $0x41]]
    %s182 = sld [smem:[#allocation7 + $0x42]]
    %s183 = sld [smem:[#allocation7 + $0x43]]
    %s184 = sld [smem:[#allocation7 + $0x44]]
    %s185 = sld [smem:[#allocation7 + $0x45]]
    %s186 = sld [smem:[#allocation7 + $0x46]]
    %s187 = sld [smem:[#allocation7 + $0x47]]
    %s188 = sld [smem:[#allocation7 + $0x48]]
    %s189 = sld [smem:[#allocation7 + $0x49]]
    %s190 = sld [smem:[#allocation7 + $0x4a]]
    %s191 = sld [smem:[#allocation7 + $0x4b]]
    %s192 = sld [smem:[#allocation7 + $0x4c]]
    %s193 = sld [smem:[#allocation7 + $0x4d]]
    %s194 = sld [smem:[#allocation7 + $0x4e]]
    %s195 = sld [smem:[#allocation7 + $0x4f]]
    %s196 = sld [smem:[#allocation7 + $0x50]]
    %s197 = sld [smem:[#allocation7 + $0x51]]
    %s198 = sld [smem:[#allocation7 + $0x52]]
    %s199 = sld [smem:[#allocation7 + $0x53]]
    %s200 = sld [smem:[#allocation7 + $0x54]]
    %s201 = sld [smem:[#allocation7 + $0x55]]
    %s202 = sld [smem:[#allocation7 + $0x56]]
    %s203 = sld [smem:[#allocation7 + $0x57]]
    %s204 = sld [smem:[#allocation7 + $0x58]]
    %s205 = sld [smem:[#allocation7 + $0x59]]
    %s206 = sld [smem:[#allocation7 + $0x5a]]
    %s207 = sld [smem:[#allocation7 + $0x5b]]
    %s208 = sld [smem:[#allocation7 + $0x5c]]
    %s209 = sld [smem:[#allocation7 + $0x5d]]
    %s210 = sld [smem:[#allocation7 + $0x5e]]
    %s211 = sld [smem:[#allocation7 + $0x5f]]
    %s212 = sld [smem:[#allocation7 + $0x60]]
    %s213 = sld [smem:[#allocation7 + $0x61]]
    %s214 = sld [smem:[#allocation7 + $0x62]]
    %s215 = sld [smem:[#allocation7 + $0x63]]
    %s216 = sld [smem:[#allocation8]]
    %s217 = sld [smem:[#allocation8 + $0x1]]
    %s218 = sld [smem:[#allocation8 + $0x2]]
    %s219 = sld [smem:[#allocation8 + $0x3]]
    %s220 = sld [smem:[#allocation8 + $0x4]]
    %s221 = sld [smem:[#allocation8 + $0x5]]
    %s222 = sld [smem:[#allocation8 + $0x6]]
    %s223 = sld [smem:[#allocation8 + $0x7]]
    %s224 = sld [smem:[#allocation8 + $0x8]]
    %s225 = sld [smem:[#allocation8 + $0x9]]
    %s226 = sld [smem:[#allocation10]]
    %s227 = sld [smem:[#allocation10 + $0x1]]
    %s228 = sld [smem:[#allocation10 + $0x2]]
    %s229 = sld [smem:[#allocation10 + $0x3]]
    %s230 = sld [smem:[#allocation10 + $0x4]]
    %s231 = sld [smem:[#allocation10 + $0x5]]
    %s232 = sld [smem:[#allocation10 + $0x6]]
    %s233 = sld [smem:[#allocation10 + $0x7]]
    %s234 = sld [smem:[#allocation10 + $0x8]]
    %s235 = sld [smem:[#allocation10 + $0x9]]
    %s236 = sld [smem:[#allocation2]]
    %v237 = vld [vmem:[%s6] sm:$0xff]
    %v238 = vld [vmem:[%s6 + $0x8] sm:$0xff]
    %s239 = sadd.s32 0, 2
    %s240 = smul.addr %s239, 8
    %s241 = scalar_lea.vmem %s6, %s240
    %v242 = vld [vmem:[%s241] sm:$0xff]
    %v243 = vld [vmem:[%s241 + $0x8] sm:$0xff]
    %v244 = vstv %s86
    %v245 = vmul.f32 %v244, %v237
    %v246 = vmul.f32 %v244, %v238
    %v247 = vstv %s87
    %v248 = vmul.f32 %v247, %v242
    %v249 = vmul.f32 %v247, %v243
    %v250 = vadd.f32 %v245, %v248
    %v251 = vadd.f32 %v246, %v249
    %v252 = vstv %s106
    %v253 = vadd.f32 %v250, %v252
    %v254 = vadd.f32 %v251, %v252
    %v255 = vmax.f32 %v253, 0.0
    %v256 = vmax.f32 %v254, 0.0
    %v257 = vstv %s88
    %v258 = vmul.f32 %v257, %v237
    %v259 = vmul.f32 %v257, %v238
    %v260 = vstv %s89
    %v261 = vmul.f32 %v260, %v242
    %v262 = vmul.f32 %v260, %v243
    %v263 = vadd.f32 %v258, %v261
    %v264 = vadd.f32 %v259, %v262
    %v265 = vstv %s107
    %v266 = vadd.f32 %v263, %v265
    %v267 = vadd.f32 %v264, %v265
    %v268 = vmax.f32 %v266, 0.0
    %v269 = vmax.f32 %v267, 0.0
    %v270 = vstv %s90
    %v271 = vmul.f32 %v270, %v237
    %v272 = vmul.f32 %v270, %v238
    %v273 = vstv %s91
    %v274 = vmul.f32 %v273, %v242
    %v275 = vmul.f32 %v273, %v243
    %v276 = vadd.f32 %v271, %v274
    %v277 = vadd.f32 %v272, %v275
    %v278 = vstv %s108
    %v279 = vadd.f32 %v276, %v278
    %v280 = vadd.f32 %v277, %v278
    %v281 = vmax.f32 %v279, 0.0
    %v282 = vmax.f32 %v280, 0.0
    %v283 = vstv %s92
    %v284 = vmul.f32 %v283, %v237
    %v285 = vmul.f32 %v283, %v238
    %v286 = vstv %s93
    %v287 = vmul.f32 %v286, %v242
    %v288 = vmul.f32 %v286, %v243
    %v289 = vadd.f32 %v284, %v287
    %v290 = vadd.f32 %v285, %v288
    %v291 = vstv %s109
    %v292 = vadd.f32 %v289, %v291
    %v293 = vadd.f32 %v290, %v291
    %v294 = vmax.f32 %v292, 0.0
    %v295 = vmax.f32 %v293, 0.0
    %v296 = vstv %s94
    %v297 = vmul.f32 %v296, %v237
    %v298 = vmul.f32 %v296, %v238
    %v299 = vstv %s95
    %v300 = vmul.f32 %v299, %v242
    %v301 = vmul.f32 %v299, %v243
    %v302 = vadd.f32 %v297, %v300
    %v303 = vadd.f32 %v298, %v301
    %v304 = vstv %s110
    %v305 = vadd.f32 %v302, %v304
    %v306 = vadd.f32 %v303, %v304
    %v307 = vmax.f32 %v305, 0.0
    %v308 = vmax.f32 %v306, 0.0
    %v309 = vstv %s96
    %v310 = vmul.f32 %v309, %v237
    %v311 = vmul.f32 %v309, %v238
    %v312 = vstv %s97
    %v313 = vmul.f32 %v312, %v242
    %v314 = vmul.f32 %v312, %v243
    %v315 = vadd.f32 %v310, %v313
    %v316 = vadd.f32 %v311, %v314
    %v317 = vstv %s111
    %v318 = vadd.f32 %v315, %v317
    %v319 = vadd.f32 %v316, %v317
    %v320 = vmax.f32 %v318, 0.0
    %v321 = vmax.f32 %v319, 0.0
    %v322 = vstv %s98
    %v323 = vmul.f32 %v322, %v237
    %v324 = vmul.f32 %v322, %v238
    %v325 = vstv %s99
    %v326 = vmul.f32 %v325, %v242
    %v327 = vmul.f32 %v325, %v243
    %v328 = vadd.f32 %v323, %v326
    %v329 = vadd.f32 %v324, %v327
    %v330 = vstv %s112
    %v331 = vadd.f32 %v328, %v330
    %v332 = vadd.f32 %v329, %v330
    %v333 = vmax.f32 %v331, 0.0
    %v334 = vmax.f32 %v332, 0.0
    %v335 = vstv %s100
    %v336 = vmul.f32 %v335, %v237
    %v337 = vmul.f32 %v335, %v238
    %v338 = vstv %s101
    %v339 = vmul.f32 %v338, %v242
    %v340 = vmul.f32 %v338, %v243
    %v341 = vadd.f32 %v336, %v339
    %v342 = vadd.f32 %v337, %v340
    %v343 = vstv %s113
    %v344 = vadd.f32 %v341, %v343
    %v345 = vadd.f32 %v342, %v343
    %v346 = vmax.f32 %v344, 0.0
    %v347 = vmax.f32 %v345, 0.0
    %v348 = vstv %s102
    %v349 = vmul.f32 %v348, %v237
    %v350 = vmul.f32 %v348, %v238
    %v351 = vstv %s103
    %v352 = vmul.f32 %v351, %v242
    %v353 = vmul.f32 %v351, %v243
    %v354 = vadd.f32 %v349, %v352
    %v355 = vadd.f32 %v350, %v353
    %v356 = vstv %s114
    %v357 = vadd.f32 %v354, %v356
    %v358 = vadd.f32 %v355, %v356
    %v359 = vmax.f32 %v357, 0.0
    %v360 = vmax.f32 %v358, 0.0
    %v361 = vstv %s104
    %v362 = vmul.f32 %v361, %v237
    %v363 = vmul.f32 %v361, %v238
    %v364 = vstv %s105
    %v365 = vmul.f32 %v364, %v242
    %v366 = vmul.f32 %v364, %v243
    %v367 = vadd.f32 %v362, %v365
    %v368 = vadd.f32 %v363, %v366
    %v369 = vstv %s115
    %v370 = vadd.f32 %v367, %v369
    %v371 = vadd.f32 %v368, %v369
    %v372 = vmax.f32 %v370, 0.0
    %v373 = vmax.f32 %v371, 0.0
    %v374 = vstv %s116
    %v375 = vmul.f32 %v374, %v255
    %v376 = vmul.f32 %v374, %v256
    %v377 = vstv %s117
    %v378 = vmul.f32 %v377, %v268
    %v379 = vmul.f32 %v377, %v269
    %v380 = vadd.f32 %v375, %v378
    %v381 = vadd.f32 %v376, %v379
    %v382 = vstv %s118
    %v383 = vmul.f32 %v382, %v281
    %v384 = vmul.f32 %v382, %v282
    %v385 = vadd.f32 %v380, %v383
    %v386 = vadd.f32 %v381, %v384
    %v387 = vstv %s119
    %v388 = vmul.f32 %v387, %v294
    %v389 = vmul.f32 %v387, %v295
    %v390 = vadd.f32 %v385, %v388
    %v391 = vadd.f32 %v386, %v389
    %v392 = vstv %s120
    %v393 = vmul.f32 %v392, %v307
    %v394 = vmul.f32 %v392, %v308
    %v395 = vadd.f32 %v390, %v393
    %v396 = vadd.f32 %v391, %v394
    %v397 = vstv %s121
    %v398 = vmul.f32 %v397, %v320
    %v399 = vmul.f32 %v397, %v321
    %v400 = vadd.f32 %v395, %v398
    %v401 = vadd.f32 %v396, %v399
    %v402 = vstv %s122
    %v403 = vmul.f32 %v402, %v333
    %v404 = vmul.f32 %v402, %v334
    %v405 = vadd.f32 %v400, %v403
    %v406 = vadd.f32 %v401, %v404
    %v407 = vstv %s123
    %v408 = vmul.f32 %v407, %v346
    %v409 = vmul.f32 %v407, %v347
    %v410 = vadd.f32 %v405, %v408
    %v411 = vadd.f32 %v406, %v409
    %v412 = vstv %s124
    %v413 = vmul.f32 %v412, %v359
    %v414 = vmul.f32 %v412, %v360
    %v415 = vadd.f32 %v410, %v413
    %v416 = vadd.f32 %v411, %v414
    %v417 = vstv %s125
    %v418 = vmul.f32 %v417, %v372
    %v419 = vmul.f32 %v417, %v373
    %v420 = vadd.f32 %v415, %v418
    %v421 = vadd.f32 %v416, %v419
    %v422 = vstv %s216
    %v423 = vadd.f32 %v420, %v422
    %v424 = vadd.f32 %v421, %v422
    %v425 = vmax.f32 %v423, 0.0
    %v426 = vmax.f32 %v424, 0.0
    %v427 = vstv %s226
    %v428 = vmul.f32 %v427, %v425
    %v429 = vmul.f32 %v427, %v426
    %v430 = vstv %s126
    %v431 = vmul.f32 %v430, %v255
    %v432 = vmul.f32 %v430, %v256
    %v433 = vstv %s127
    %v434 = vmul.f32 %v433, %v268
    %v435 = vmul.f32 %v433, %v269
    %v436 = vadd.f32 %v431, %v434
    %v437 = vadd.f32 %v432, %v435
    %v438 = vstv %s128
    %v439 = vmul.f32 %v438, %v281
    %v440 = vmul.f32 %v438, %v282
    %v441 = vadd.f32 %v436, %v439
    %v442 = vadd.f32 %v437, %v440
    %v443 = vstv %s129
    %v444 = vmul.f32 %v443, %v294
    %v445 = vmul.f32 %v443, %v295
    %v446 = vadd.f32 %v441, %v444
    %v447 = vadd.f32 %v442, %v445
    %v448 = vstv %s130
    %v449 = vmul.f32 %v448, %v307
    %v450 = vmul.f32 %v448, %v308
    %v451 = vadd.f32 %v446, %v449
    %v452 = vadd.f32 %v447, %v450
    %v453 = vstv %s131
    %v454 = vmul.f32 %v453, %v320
    %v455 = vmul.f32 %v453, %v321
    %v456 = vadd.f32 %v451, %v454
    %v457 = vadd.f32 %v452, %v455
    %v458 = vstv %s132
    %v459 = vmul.f32 %v458, %v333
    %v460 = vmul.f32 %v458, %v334
    %v461 = vadd.f32 %v456, %v459
    %v462 = vadd.f32 %v457, %v460
    %v463 = vstv %s133
    %v464 = vmul.f32 %v463, %v346
    %v465 = vmul.f32 %v463, %v347
    %v466 = vadd.f32 %v461, %v464
    %v467 = vadd.f32 %v462, %v465
    %v468 = vstv %s134
    %v469 = vmul.f32 %v468, %v359
    %v470 = vmul.f32 %v468, %v360
    %v471 = vadd.f32 %v466, %v469
    %v472 = vadd.f32 %v467, %v470
    %v473 = vstv %s135
    %v474 = vmul.f32 %v473, %v372
    %v475 = vmul.f32 %v473, %v373
    %v476 = vadd.f32 %v471, %v474
    %v477 = vadd.f32 %v472, %v475
    %v478 = vstv %s217
    %v479 = vadd.f32 %v476, %v478
    %v480 = vadd.f32 %v477, %v478
    %v481 = vmax.f32 %v479, 0.0
    %v482 = vmax.f32 %v480, 0.0
    %v483 = vstv %s227
    %v484 = vmul.f32 %v483, %v481
    %v485 = vmul.f32 %v483, %v482
    %v486 = vadd.f32 %v428, %v484
    %v487 = vadd.f32 %v429, %v485
    %v488 = vstv %s136
    %v489 = vmul.f32 %v488, %v255
    %v490 = vmul.f32 %v488, %v256
    %v491 = vstv %s137
    %v492 = vmul.f32 %v491, %v268
    %v493 = vmul.f32 %v491, %v269
    %v494 = vadd.f32 %v489, %v492
    %v495 = vadd.f32 %v490, %v493
    %v496 = vstv %s138
    %v497 = vmul.f32 %v496, %v281
    %v498 = vmul.f32 %v496, %v282
    %v499 = vadd.f32 %v494, %v497
    %v500 = vadd.f32 %v495, %v498
    %v501 = vstv %s139
    %v502 = vmul.f32 %v501, %v294
    %v503 = vmul.f32 %v501, %v295
    %v504 = vadd.f32 %v499, %v502
    %v505 = vadd.f32 %v500, %v503
    %v506 = vstv %s140
    %v507 = vmul.f32 %v506, %v307
    %v508 = vmul.f32 %v506, %v308
    %v509 = vadd.f32 %v504, %v507
    %v510 = vadd.f32 %v505, %v508
    %v511 = vstv %s141
    %v512 = vmul.f32 %v511, %v320
    %v513 = vmul.f32 %v511, %v321
    %v514 = vadd.f32 %v509, %v512
    %v515 = vadd.f32 %v510, %v513
    %v516 = vstv %s142
    %v517 = vmul.f32 %v516, %v333
    %v518 = vmul.f32 %v516, %v334
    %v519 = vadd.f32 %v514, %v517
    %v520 = vadd.f32 %v515, %v518
    %v521 = vstv %s143
    %v522 = vmul.f32 %v521, %v346
    %v523 = vmul.f32 %v521, %v347
    %v524 = vadd.f32 %v519, %v522
    %v525 = vadd.f32 %v520, %v523
    %v526 = vstv %s144
    %v527 = vmul.f32 %v526, %v359
    %v528 = vmul.f32 %v526, %v360
    %v529 = vadd.f32 %v524, %v527
    %v530 = vadd.f32 %v525, %v528
    %v531 = vstv %s145
    %v532 = vmul.f32 %v531, %v372
    %v533 = vmul.f32 %v531, %v373
    %v534 = vadd.f32 %v529, %v532
    %v535 = vadd.f32 %v530, %v533
    %v536 = vstv %s218
    %v537 = vadd.f32 %v534, %v536
    %v538 = vadd.f32 %v535, %v536
    %v539 = vmax.f32 %v537, 0.0
    %v540 = vmax.f32 %v538, 0.0
    %v541 = vstv %s228
    %v542 = vmul.f32 %v541, %v539
    %v543 = vmul.f32 %v541, %v540
    %v544 = vadd.f32 %v486, %v542
    %v545 = vadd.f32 %v487, %v543
    %v546 = vstv %s146
    %v547 = vmul.f32 %v546, %v255
    %v548 = vmul.f32 %v546, %v256
    %v549 = vstv %s147
    %v550 = vmul.f32 %v549, %v268
    %v551 = vmul.f32 %v549, %v269
    %v552 = vadd.f32 %v547, %v550
    %v553 = vadd.f32 %v548, %v551
    %v554 = vstv %s148
    %v555 = vmul.f32 %v554, %v281
    %v556 = vmul.f32 %v554, %v282
    %v557 = vadd.f32 %v552, %v555
    %v558 = vadd.f32 %v553, %v556
    %v559 = vstv %s149
    %v560 = vmul.f32 %v559, %v294
    %v561 = vmul.f32 %v559, %v295
    %v562 = vadd.f32 %v557, %v560
    %v563 = vadd.f32 %v558, %v561
    %v564 = vstv %s150
    %v565 = vmul.f32 %v564, %v307
    %v566 = vmul.f32 %v564, %v308
    %v567 = vadd.f32 %v562, %v565
    %v568 = vadd.f32 %v563, %v566
    %v569 = vstv %s151
    %v570 = vmul.f32 %v569, %v320
    %v571 = vmul.f32 %v569, %v321
    %v572 = vadd.f32 %v567, %v570
    %v573 = vadd.f32 %v568, %v571
    %v574 = vstv %s152
    %v575 = vmul.f32 %v574, %v333
    %v576 = vmul.f32 %v574, %v334
    %v577 = vadd.f32 %v572, %v575
    %v578 = vadd.f32 %v573, %v576
    %v579 = vstv %s153
    %v580 = vmul.f32 %v579, %v346
    %v581 = vmul.f32 %v579, %v347
    %v582 = vadd.f32 %v577, %v580
    %v583 = vadd.f32 %v578, %v581
    %v584 = vstv %s154
    %v585 = vmul.f32 %v584, %v359
    %v586 = vmul.f32 %v584, %v360
    %v587 = vadd.f32 %v582, %v585
    %v588 = vadd.f32 %v583, %v586
    %v589 = vstv %s155
    %v590 = vmul.f32 %v589, %v372
    %v591 = vmul.f32 %v589, %v373
    %v592 = vadd.f32 %v587, %v590
    %v593 = vadd.f32 %v588, %v591
    %v594 = vstv %s219
    %v595 = vadd.f32 %v592, %v594
    %v596 = vadd.f32 %v593, %v594
    %v597 = vmax.f32 %v595, 0.0
    %v598 = vmax.f32 %v596, 0.0
    %v599 = vstv %s229
    %v600 = vmul.f32 %v599, %v597
    %v601 = vmul.f32 %v599, %v598
    %v602 = vadd.f32 %v544, %v600
    %v603 = vadd.f32 %v545, %v601
    %v604 = vstv %s156
    %v605 = vmul.f32 %v604, %v255
    %v606 = vmul.f32 %v604, %v256
    %v607 = vstv %s157
    %v608 = vmul.f32 %v607, %v268
    %v609 = vmul.f32 %v607, %v269
    %v610 = vadd.f32 %v605, %v608
    %v611 = vadd.f32 %v606, %v609
    %v612 = vstv %s158
    %v613 = vmul.f32 %v612, %v281
    %v614 = vmul.f32 %v612, %v282
    %v615 = vadd.f32 %v610, %v613
    %v616 = vadd.f32 %v611, %v614
    %v617 = vstv %s159
    %v618 = vmul.f32 %v617, %v294
    %v619 = vmul.f32 %v617, %v295
    %v620 = vadd.f32 %v615, %v618
    %v621 = vadd.f32 %v616, %v619
    %v622 = vstv %s160
    %v623 = vmul.f32 %v622, %v307
    %v624 = vmul.f32 %v622, %v308
    %v625 = vadd.f32 %v620, %v623
    %v626 = vadd.f32 %v621, %v624
    %v627 = vstv %s161
    %v628 = vmul.f32 %v627, %v320
    %v629 = vmul.f32 %v627, %v321
    %v630 = vadd.f32 %v625, %v628
    %v631 = vadd.f32 %v626, %v629
    %v632 = vstv %s162
    %v633 = vmul.f32 %v632, %v333
    %v634 = vmul.f32 %v632, %v334
    %v635 = vadd.f32 %v630, %v633
    %v636 = vadd.f32 %v631, %v634
    %v637 = vstv %s163
    %v638 = vmul.f32 %v637, %v346
    %v639 = vmul.f32 %v637, %v347
    %v640 = vadd.f32 %v635, %v638
    %v641 = vadd.f32 %v636, %v639
    %v642 = vstv %s164
    %v643 = vmul.f32 %v642, %v359
    %v644 = vmul.f32 %v642, %v360
    %v645 = vadd.f32 %v640, %v643
    %v646 = vadd.f32 %v641, %v644
    %v647 = vstv %s165
    %v648 = vmul.f32 %v647, %v372
    %v649 = vmul.f32 %v647, %v373
    %v650 = vadd.f32 %v645, %v648
    %v651 = vadd.f32 %v646, %v649
    %v652 = vstv %s220
    %v653 = vadd.f32 %v650, %v652
    %v654 = vadd.f32 %v651, %v652
    %v655 = vmax.f32 %v653, 0.0
    %v656 = vmax.f32 %v654, 0.0
    %v657 = vstv %s230
    %v658 = vmul.f32 %v657, %v655
    %v659 = vmul.f32 %v657, %v656
    %v660 = vadd.f32 %v602, %v658
    %v661 = vadd.f32 %v603, %v659
    %v662 = vstv %s166
    %v663 = vmul.f32 %v662, %v255
    %v664 = vmul.f32 %v662, %v256
    %v665 = vstv %s167
    %v666 = vmul.f32 %v665, %v268
    %v667 = vmul.f32 %v665, %v269
    %v668 = vadd.f32 %v663, %v666
    %v669 = vadd.f32 %v664, %v667
    %v670 = vstv %s168
    %v671 = vmul.f32 %v670, %v281
    %v672 = vmul.f32 %v670, %v282
    %v673 = vadd.f32 %v668, %v671
    %v674 = vadd.f32 %v669, %v672
    %v675 = vstv %s169
    %v676 = vmul.f32 %v675, %v294
    %v677 = vmul.f32 %v675, %v295
    %v678 = vadd.f32 %v673, %v676
    %v679 = vadd.f32 %v674, %v677
    %v680 = vstv %s170
    %v681 = vmul.f32 %v680, %v307
    %v682 = vmul.f32 %v680, %v308
    %v683 = vadd.f32 %v678, %v681
    %v684 = vadd.f32 %v679, %v682
    %v685 = vstv %s171
    %v686 = vmul.f32 %v685, %v320
    %v687 = vmul.f32 %v685, %v321
    %v688 = vadd.f32 %v683, %v686
    %v689 = vadd.f32 %v684, %v687
    %v690 = vstv %s172
    %v691 = vmul.f32 %v690, %v333
    %v692 = vmul.f32 %v690, %v334
    %v693 = vadd.f32 %v688, %v691
    %v694 = vadd.f32 %v689, %v692
    %v695 = vstv %s173
    %v696 = vmul.f32 %v695, %v346
    %v697 = vmul.f32 %v695, %v347
    %v698 = vadd.f32 %v693, %v696
    %v699 = vadd.f32 %v694, %v697
    %v700 = vstv %s174
    %v701 = vmul.f32 %v700, %v359
    %v702 = vmul.f32 %v700, %v360
    %v703 = vadd.f32 %v698, %v701
    %v704 = vadd.f32 %v699, %v702
    %v705 = vstv %s175
    %v706 = vmul.f32 %v705, %v372
    %v707 = vmul.f32 %v705, %v373
    %v708 = vadd.f32 %v703, %v706
    %v709 = vadd.f32 %v704, %v707
    %v710 = vstv %s221
    %v711 = vadd.f32 %v708, %v710
    %v712 = vadd.f32 %v709, %v710
    %v713 = vmax.f32 %v711, 0.0
    %v714 = vmax.f32 %v712, 0.0
    %v715 = vstv %s231
    %v716 = vmul.f32 %v715, %v713
    %v717 = vmul.f32 %v715, %v714
    %v718 = vadd.f32 %v660, %v716
    %v719 = vadd.f32 %v661, %v717
    %v720 = vstv %s176
    %v721 = vmul.f32 %v720, %v255
    %v722 = vmul.f32 %v720, %v256
    %v723 = vstv %s177
    %v724 = vmul.f32 %v723, %v268
    %v725 = vmul.f32 %v723, %v269
    %v726 = vadd.f32 %v721, %v724
    %v727 = vadd.f32 %v722, %v725
    %v728 = vstv %s178
    %v729 = vmul.f32 %v728, %v281
    %v730 = vmul.f32 %v728, %v282
    %v731 = vadd.f32 %v726, %v729
    %v732 = vadd.f32 %v727, %v730
    %v733 = vstv %s179
    %v734 = vmul.f32 %v733, %v294
    %v735 = vmul.f32 %v733, %v295
    %v736 = vadd.f32 %v731, %v734
    %v737 = vadd.f32 %v732, %v735
    %v738 = vstv %s180
    %v739 = vmul.f32 %v738, %v307
    %v740 = vmul.f32 %v738, %v308
    %v741 = vadd.f32 %v736, %v739
    %v742 = vadd.f32 %v737, %v740
    %v743 = vstv %s181
    %v744 = vmul.f32 %v743, %v320
    %v745 = vmul.f32 %v743, %v321
    %v746 = vadd.f32 %v741, %v744
    %v747 = vadd.f32 %v742, %v745
    %v748 = vstv %s182
    %v749 = vmul.f32 %v748, %v333
    %v750 = vmul.f32 %v748, %v334
    %v751 = vadd.f32 %v746, %v749
    %v752 = vadd.f32 %v747, %v750
    %v753 = vstv %s183
    %v754 = vmul.f32 %v753, %v346
    %v755 = vmul.f32 %v753, %v347
    %v756 = vadd.f32 %v751, %v754
    %v757 = vadd.f32 %v752, %v755
    %v758 = vstv %s184
    %v759 = vmul.f32 %v758, %v359
    %v760 = vmul.f32 %v758, %v360
    %v761 = vadd.f32 %v756, %v759
    %v762 = vadd.f32 %v757, %v760
    %v763 = vstv %s185
    %v764 = vmul.f32 %v763, %v372
    %v765 = vmul.f32 %v763, %v373
    %v766 = vadd.f32 %v761, %v764
    %v767 = vadd.f32 %v762, %v765
    %v768 = vstv %s222
    %v769 = vadd.f32 %v766, %v768
    %v770 = vadd.f32 %v767, %v768
    %v771 = vmax.f32 %v769, 0.0
    %v772 = vmax.f32 %v770, 0.0
    %v773 = vstv %s232
    %v774 = vmul.f32 %v773, %v771
    %v775 = vmul.f32 %v773, %v772
    %v776 = vadd.f32 %v718, %v774
    %v777 = vadd.f32 %v719, %v775
    %v778 = vstv %s186
    %v779 = vmul.f32 %v778, %v255
    %v780 = vmul.f32 %v778, %v256
    %v781 = vstv %s187
    %v782 = vmul.f32 %v781, %v268
    %v783 = vmul.f32 %v781, %v269
    %v784 = vadd.f32 %v779, %v782
    %v785 = vadd.f32 %v780, %v783
    %v786 = vstv %s188
    %v787 = vmul.f32 %v786, %v281
    %v788 = vmul.f32 %v786, %v282
    %v789 = vadd.f32 %v784, %v787
    %v790 = vadd.f32 %v785, %v788
    %v791 = vstv %s189
    %v792 = vmul.f32 %v791, %v294
    %v793 = vmul.f32 %v791, %v295
    %v794 = vadd.f32 %v789, %v792
    %v795 = vadd.f32 %v790, %v793
    %v796 = vstv %s190
    %v797 = vmul.f32 %v796, %v307
    %v798 = vmul.f32 %v796, %v308
    %v799 = vadd.f32 %v794, %v797
    %v800 = vadd.f32 %v795, %v798
    %v801 = vstv %s191
    %v802 = vmul.f32 %v801, %v320
    %v803 = vmul.f32 %v801, %v321
    %v804 = vadd.f32 %v799, %v802
    %v805 = vadd.f32 %v800, %v803
    %v806 = vstv %s192
    %v807 = vmul.f32 %v806, %v333
    %v808 = vmul.f32 %v806, %v334
    %v809 = vadd.f32 %v804, %v807
    %v810 = vadd.f32 %v805, %v808
    %v811 = vstv %s193
    %v812 = vmul.f32 %v811, %v346
    %v813 = vmul.f32 %v811, %v347
    %v814 = vadd.f32 %v809, %v812
    %v815 = vadd.f32 %v810, %v813
    %v816 = vstv %s194
    %v817 = vmul.f32 %v816, %v359
    %v818 = vmul.f32 %v816, %v360
    %v819 = vadd.f32 %v814, %v817
    %v820 = vadd.f32 %v815, %v818
    %v821 = vstv %s195
    %v822 = vmul.f32 %v821, %v372
    %v823 = vmul.f32 %v821, %v373
    %v824 = vadd.f32 %v819, %v822
    %v825 = vadd.f32 %v820, %v823
    %v826 = vstv %s223
    %v827 = vadd.f32 %v824, %v826
    %v828 = vadd.f32 %v825, %v826
    %v829 = vmax.f32 %v827, 0.0
    %v830 = vmax.f32 %v828, 0.0
    %v831 = vstv %s233
    %v832 = vmul.f32 %v831, %v829
    %v833 = vmul.f32 %v831, %v830
    %v834 = vadd.f32 %v776, %v832
    %v835 = vadd.f32 %v777, %v833
    %v836 = vstv %s196
    %v837 = vmul.f32 %v836, %v255
    %v838 = vmul.f32 %v836, %v256
    %v839 = vstv %s197
    %v840 = vmul.f32 %v839, %v268
    %v841 = vmul.f32 %v839, %v269
    %v842 = vadd.f32 %v837, %v840
    %v843 = vadd.f32 %v838, %v841
    %v844 = vstv %s198
    %v845 = vmul.f32 %v844, %v281
    %v846 = vmul.f32 %v844, %v282
    %v847 = vadd.f32 %v842, %v845
    %v848 = vadd.f32 %v843, %v846
    %v849 = vstv %s199
    %v850 = vmul.f32 %v849, %v294
    %v851 = vmul.f32 %v849, %v295
    %v852 = vadd.f32 %v847, %v850
    %v853 = vadd.f32 %v848, %v851
    %v854 = vstv %s200
    %v855 = vmul.f32 %v854, %v307
    %v856 = vmul.f32 %v854, %v308
    %v857 = vadd.f32 %v852, %v855
    %v858 = vadd.f32 %v853, %v856
    %v859 = vstv %s201
    %v860 = vmul.f32 %v859, %v320
    %v861 = vmul.f32 %v859, %v321
    %v862 = vadd.f32 %v857, %v860
    %v863 = vadd.f32 %v858, %v861
    %v864 = vstv %s202
    %v865 = vmul.f32 %v864, %v333
    %v866 = vmul.f32 %v864, %v334
    %v867 = vadd.f32 %v862, %v865
    %v868 = vadd.f32 %v863, %v866
    %v869 = vstv %s203
    %v870 = vmul.f32 %v869, %v346
    %v871 = vmul.f32 %v869, %v347
    %v872 = vadd.f32 %v867, %v870
    %v873 = vadd.f32 %v868, %v871
    %v874 = vstv %s204
    %v875 = vmul.f32 %v874, %v359
    %v876 = vmul.f32 %v874, %v360
    %v877 = vadd.f32 %v872, %v875
    %v878 = vadd.f32 %v873, %v876
    %v879 = vstv %s205
    %v880 = vmul.f32 %v879, %v372
    %v881 = vmul.f32 %v879, %v373
    %v882 = vadd.f32 %v877, %v880
    %v883 = vadd.f32 %v878, %v881
    %v884 = vstv %s224
    %v885 = vadd.f32 %v882, %v884
    %v886 = vadd.f32 %v883, %v884
    %v887 = vmax.f32 %v885, 0.0
    %v888 = vmax.f32 %v886, 0.0
    %v889 = vstv %s234
    %v890 = vmul.f32 %v889, %v887
    %v891 = vmul.f32 %v889, %v888
    %v892 = vadd.f32 %v834, %v890
    %v893 = vadd.f32 %v835, %v891
    %v894 = vstv %s206
    %v895 = vmul.f32 %v894, %v255
    %v896 = vmul.f32 %v894, %v256
    %v897 = vstv %s207
    %v898 = vmul.f32 %v897, %v268
    %v899 = vmul.f32 %v897, %v269
    %v900 = vadd.f32 %v895, %v898
    %v901 = vadd.f32 %v896, %v899
    %v902 = vstv %s208
    %v903 = vmul.f32 %v902, %v281
    %v904 = vmul.f32 %v902, %v282
    %v905 = vadd.f32 %v900, %v903
    %v906 = vadd.f32 %v901, %v904
    %v907 = vstv %s209
    %v908 = vmul.f32 %v907, %v294
    %v909 = vmul.f32 %v907, %v295
    %v910 = vadd.f32 %v905, %v908
    %v911 = vadd.f32 %v906, %v909
    %v912 = vstv %s210
    %v913 = vmul.f32 %v912, %v307
    %v914 = vmul.f32 %v912, %v308
    %v915 = vadd.f32 %v910, %v913
    %v916 = vadd.f32 %v911, %v914
    %v917 = vstv %s211
    %v918 = vmul.f32 %v917, %v320
    %v919 = vmul.f32 %v917, %v321
    %v920 = vadd.f32 %v915, %v918
    %v921 = vadd.f32 %v916, %v919
    %v922 = vstv %s212
    %v923 = vmul.f32 %v922, %v333
    %v924 = vmul.f32 %v922, %v334
    %v925 = vadd.f32 %v920, %v923
    %v926 = vadd.f32 %v921, %v924
    %v927 = vstv %s213
    %v928 = vmul.f32 %v927, %v346
    %v929 = vmul.f32 %v927, %v347
    %v930 = vadd.f32 %v925, %v928
    %v931 = vadd.f32 %v926, %v929
    %v932 = vstv %s214
    %v933 = vmul.f32 %v932, %v359
    %v934 = vmul.f32 %v932, %v360
    %v935 = vadd.f32 %v930, %v933
    %v936 = vadd.f32 %v931, %v934
    %v937 = vstv %s215
    %v938 = vmul.f32 %v937, %v372
    %v939 = vmul.f32 %v937, %v373
    %v940 = vadd.f32 %v935, %v938
    %v941 = vadd.f32 %v936, %v939
    %v942 = vstv %s225
    %v943 = vadd.f32 %v940, %v942
    %v944 = vadd.f32 %v941, %v942
    %v945 = vmax.f32 %v943, 0.0
    %v946 = vmax.f32 %v944, 0.0
    %v947 = vstv %s235
    %v948 = vmul.f32 %v947, %v945
    %v949 = vmul.f32 %v947, %v946
    %v950 = vadd.f32 %v892, %v948
    %v951 = vadd.f32 %v893, %v949
    %v952 = vstv %s236
    %v953 = vadd.f32 %v950, %v952
    %v954 = vadd.f32 %v951, %v952
    %955 = vst [vmem:[%s7] sm:$0xff] %v953
    %956 = vst [vmem:[%s7 + $0x8] sm:$0xff] %v954
    // Predicated region
    $region50: #{circle_model_v4.1} parent=1 // pred_check
      _
    $region51: #{circle_model_v4.1} parent=1 // pred_check_branch
      %958 = sbr.rel (0) target = $region53
    $region52: #{circle_model_v4.1} parent=1 // pred_region
      _
    $region53: #{circle_model_v4.1} parent=1 // pred_fallthru
      _
    // Predicated region
    $region54: #{circle_model_v4.1} parent=1 // pred_check
      _
    $region55: #{circle_model_v4.1} parent=1 // pred_check_branch
      %960 = sbr.rel (0) target = $region57
    $region56: #{circle_model_v4.1} parent=1 // pred_region
      _
    $region57: #{circle_model_v4.1} parent=1 // pred_fallthru
      _
    %961 = vsyncpa [#allocation4], 1
    %962 = vsyncpa [#allocation6], 1
    %963 = vsyncpa [#allocation9], 1

</llo_original>
